<compile_context>
chip_gen: v7x
topology: tpu7x:2x2x1
jax: 0.10.0
libtpu: 0.0.40
codegen_flags: <defaults>
</compile_context>

<pallas_src>
import functools

import numpy as np
import jax
import jax.numpy as jnp
from jax.experimental import pallas as pl
from jax.experimental.pallas import tpu as pltpu

EPS = 1e-5


# ---------------------------------------------------------------------------
# Kernel 1: 3x3 "SAME" conv (+ bias) for one batch element, lane-dense output,
# plus per-batch-element partial sum / sum-of-squares for BatchNorm.
# ---------------------------------------------------------------------------
def conv3x3_stats_kernel(xp_ref, wt_ref, b_ref, sel_ref,
                         y_ref, psum_ref, psumsq_ref):
    # xp_ref   : (1, H+2, (W+2)*Cin)   padded input, (w,cin) folded into lanes
    # wt_ref   : (3, (W+2)*Cin, W*Cout) Toeplitz-expanded weights
    # b_ref    : (1, W*Cout)            bias tiled over w
    # sel_ref  : (W*Cout, Cout)         channel selector (block-diag of ones)
    # y_ref    : (1, H, W*Cout)         lane-dense conv output
    # psum_ref, psumsq_ref : (1, 1, Cout) per-batch partial stats
    H = y_ref.shape[1]
    WC = y_ref.shape[2]

    xp2d = xp_ref[0]                                   # (H+2, (W+2)*Cin)

    acc = jnp.zeros((H, WC), dtype=jnp.float32)
    for kh in range(3):                                # 3 accumulating MXU matmuls
        acc += jnp.dot(xp2d[kh:kh + H, :], wt_ref[kh],
                       preferred_element_type=jnp.float32)
    acc += b_ref[...]                                  # (1, WC) broadcast over H

    # Full-width, lane-dense store (no reshape needed: acc is already (H, W*Cout)).
    y_ref[0] = acc.astype(y_ref.dtype)

    # Per-channel partial stats: fold the (w, c) lane axis back to channels with a
    # tiny selector matmul, then reduce over rows.  Stays in f32.
    sel = sel_ref[...]
    per_row = jnp.dot(acc, sel, preferred_element_type=jnp.float32)         # (H, Cout)
    per_row_sq = jnp.dot(acc * acc, sel, preferred_element_type=jnp.float32)
    psum_ref[0] = jnp.sum(per_row, axis=0, keepdims=True)
    psumsq_ref[0] = jnp.sum(per_row_sq, axis=0, keepdims=True)


def conv3x3_with_stats(x_nhwc, w_hwio, bias, y_dtype=jnp.float32):
    N, H, W, Cin = x_nhwc.shape
    Cout = w_hwio.shape[-1]
    Wp = W + 2
    WC = W * Cout

    # Zero-pad and fold (w, cin) into a single lane axis (pure row-major reshape).
    xp = jnp.pad(x_nhwc, ((0, 0), (1, 1), (1, 1), (0, 0)))
    xp2d = xp.reshape(N, H + 2, Wp * Cin)

    # Toeplitz-expanded weights: wt[kh, w'*Cin+ci, w*Cout+c] = W[kh, w'-w, ci, c]
    # for 0 <= w'-w <= 2, else 0.  Built once at trace time from the 3x3x Cin x Cout
    # HWIO weights (weight preprocessing, shared across the batch grid).
    shift_np = np.zeros((3, Wp, W), np.float32)
    for kw in range(3):
        shift_np[kw, kw:kw + W, :] = np.eye(W, dtype=np.float32)
    shift = jnp.asarray(shift_np)
    w_toep = jnp.einsum("kpw,hkic->hpiwc", shift, w_hwio.astype(jnp.float32))
    w_toep = w_toep.reshape(3, Wp * Cin, WC)

    bias_wc = jnp.tile(bias.astype(jnp.float32), W).reshape(1, WC)
    sel = jnp.asarray(np.tile(np.eye(Cout, dtype=np.float32), (W, 1)))      # (WC, Cout)

    y, psum, psumsq = pl.pallas_call(
        conv3x3_stats_kernel,
        out_shape=(
            jax.ShapeDtypeStruct((N, H, WC), y_dtype),
            jax.ShapeDtypeStruct((N, 1, Cout), jnp.float32),
            jax.ShapeDtypeStruct((N, 1, Cout), jnp.float32),
        ),
        grid_spec=pltpu.PrefetchScalarGridSpec(
            num_scalar_prefetch=0,
            grid=(N,),
            in_specs=[
                pl.BlockSpec((1, H + 2, Wp * Cin), lambda n: (n, 0, 0)),
                pl.BlockSpec((3, Wp * Cin, WC), lambda n: (0, 0, 0)),
                pl.BlockSpec((1, WC), lambda n: (0, 0)),
                pl.BlockSpec((WC, Cout), lambda n: (0, 0)),
            ],
            out_specs=(
                pl.BlockSpec((1, H, WC), lambda n: (n, 0, 0)),
                pl.BlockSpec((1, 1, Cout), lambda n: (n, 0, 0)),   # per-batch partials
                pl.BlockSpec((1, 1, Cout), lambda n: (n, 0, 0)),
            ),
        ),
        # No revisited output blocks -> batch axis is safely parallel (v7x 2-TC).
        compiler_params=pltpu.CompilerParams(
            dimension_semantics=("parallel",)),
    )(xp2d, w_toep, bias_wc, sel)
    return y, psum, psumsq


# ---------------------------------------------------------------------------
# Kernel 2: fused batchnorm affine (precomputed scale/shift) + optional ReLU,
# lane-dense (N, H, W*C) layout, tiled over (batch, row blocks).
# ---------------------------------------------------------------------------
def bn_act_kernel(y_ref, scale_ref, shift_ref, o_ref, *, apply_relu):
    # y_ref/o_ref: (1, TH, W*C); scale/shift: (1, 1, W*C)
    y = y_ref[...].astype(jnp.float32)
    z = y * scale_ref[...] + shift_ref[...]
    if apply_relu:
        z = jnp.maximum(z, 0.0)
    o_ref[...] = z.astype(o_ref.dtype)


def bn_act(y_flat, scale, shift, W, Cout, apply_relu=True):
    N, H, WC = y_flat.shape
    # Per-(w, c) rows so the kernel is a pure lane-aligned FMA.
    scale_wc = jnp.tile(scale.astype(jnp.float32), W).reshape(1, 1, WC)
    shift_wc = jnp.tile(shift.astype(jnp.float32), W).reshape(1, 1, WC)

    sub = 8 if y_flat.dtype == jnp.float32 else 16      # sublane tile per dtype
    th = sub if H % sub == 0 else H                     # row-block -> more grid steps
    grid = (N, H // th)

    return pl.pallas_call(
        functools.partial(bn_act_kernel, apply_relu=apply_relu),
        out_shape=jax.ShapeDtypeStruct((N, H, WC), jnp.float32),
        grid_spec=pltpu.PrefetchScalarGridSpec(
            num_scalar_prefetch=0,
            grid=grid,
            in_specs=[
                pl.BlockSpec((1, th, WC), lambda n, h: (n, h, 0)),
                pl.BlockSpec((1, 1, WC), lambda n, h: (0, 0, 0)),
                pl.BlockSpec((1, 1, WC), lambda n, h: (0, 0, 0)),
            ],
            out_specs=pl.BlockSpec((1, th, WC), lambda n, h: (n, h, 0)),
        ),
        compiler_params=pltpu.CompilerParams(
            dimension_semantics=("parallel", "parallel")),
    )(y_flat, scale_wc, shift_wc)


# ---------------------------------------------------------------------------
# OneConv forward (NCHW in / NCHW out, matching the PyTorch module).
# ---------------------------------------------------------------------------
def one_conv_forward(x_nchw, params, apply_relu=True, y_store_dtype=jnp.float32):
    x = jnp.transpose(x_nchw, (0, 2, 3, 1))            # NCHW -> NHWC
    N, H, W, _ = x.shape
    Cout = params["w"].shape[-1]

    y_flat, psum, psumsq = conv3x3_with_stats(x, params["w"], params["b"],
                                              y_dtype=y_store_dtype)

    # Batch statistics (biased variance, like BatchNorm2d's normalization in training).
    cnt = float(N * H * W)
    mean = jnp.sum(psum, axis=(0, 1)) / cnt
    var = jnp.sum(psumsq, axis=(0, 1)) / cnt - mean * mean
    scale = params["gamma"] * jax.lax.rsqrt(var + EPS)
    shift = params["beta"] - mean * scale

    out_flat = bn_act(y_flat, scale, shift, W, Cout, apply_relu=apply_relu)
    out = out_flat.reshape(N, H, W, Cout)               # free: (w,c) lanes -> (w, c)
    return jnp.transpose(out, (0, 3, 1, 2))             # NHWC -> NCHW


# ---------------------------------------------------------------------------
# Pure-JAX reference for the correctness check.
# ---------------------------------------------------------------------------
def ref_one_conv(x_nchw, params, apply_relu=True):
    x = jnp.transpose(x_nchw, (0, 2, 3, 1))
    y = jax.lax.conv_general_dilated(
        x, params["w"], window_strides=(1, 1), padding="SAME",
        dimension_numbers=("NHWC", "HWIO", "NHWC"))
    y = y + params["b"][None, None, None, :]
    m = jnp.mean(y, axis=(0, 1, 2))
    v = jnp.var(y, axis=(0, 1, 2))                      # biased, matches BN training norm
    y = (y - m) * jax.lax.rsqrt(v + EPS) * params["gamma"] + params["beta"]
    if apply_relu:
        y = jnp.maximum(y, 0.0)
    return jnp.transpose(y, (0, 3, 1, 2))


def make_params(key, in_channels, out_channels):
    k1, k2 = jax.random.split(key)
    bound = 1.0 / np.sqrt(in_channels * 9)
    return {
        "w": jax.random.uniform(k1, (3, 3, in_channels, out_channels),
                                jnp.float32, -bound, bound),   # HWIO layout
        "b": jax.random.uniform(k2, (out_channels,), jnp.float32, -bound, bound),
        "gamma": jnp.ones((out_channels,), jnp.float32),        # BN gamma init
        "beta": jnp.zeros((out_channels,), jnp.float32),        # BN beta init
    }


if __name__ == "__main__":
    key = jax.random.PRNGKey(0)
    kx, kp = jax.random.split(key)

    N, Cin, Cout, H, W = 2, 4, 8, 16, 16
    x = jax.random.normal(kx, (N, Cin, H, W), dtype=jnp.float32)   # NCHW like PyTorch
    params = make_params(kp, Cin, Cout)

    out = jax.jit(one_conv_forward)(x, params)
    out = jax.block_until_ready(out)

    ref = jax.block_until_ready(ref_one_conv(x, params))
    assert out.shape == (N, Cout, H, W)
    np.testing.assert_allclose(np.asarray(out), np.asarray(ref), atol=2e-3, rtol=2e-3)

    print("KERNEL_OK")
</pallas_src>

<mosaic_0001>
module attributes {stable_mosaic.version = 11 : i64} {
  func.func @conv3x3_stats_kernel(%arg0: i32, %arg1: memref<1x18x72xf32, #tpu.memory_space<vmem>>, %arg2: memref<3x72x128xf32, #tpu.memory_space<vmem>>, %arg3: memref<1x128xf32, #tpu.memory_space<vmem>>, %arg4: memref<128x8xf32, #tpu.memory_space<vmem>>, %arg5: memref<1x16x128xf32, #tpu.memory_space<vmem>>, %arg6: memref<1x1x8xf32, #tpu.memory_space<vmem>>, %arg7: memref<1x1x8xf32, #tpu.memory_space<vmem>>) attributes {dimension_semantics = [#tpu.dimension_semantics<parallel>], iteration_bounds = array<i64: 2>, scalar_prefetch = 0 : i64, scratch_operands = 0 : i64, tpu.core_type = #tpu.core_type<tc>, window_params = [{transform_indices = @transform_0, window_bounds = array<i64: 1, 18, 72>}, {pipeline_mode = #tpu.pipeline_mode<synchronous>, transform_indices = @transform_1, window_bounds = array<i64: 3, 72, 128>}, {pipeline_mode = #tpu.pipeline_mode<synchronous>, transform_indices = @transform_2, window_bounds = array<i64: 1, 128>}, {pipeline_mode = #tpu.pipeline_mode<synchronous>, transform_indices = @transform_3, window_bounds = array<i64: 128, 8>}, {transform_indices = @transform_4, window_bounds = array<i64: 1, 16, 128>}, {transform_indices = @transform_5, window_bounds = array<i64: 1, 1, 8>}, {transform_indices = @transform_6, window_bounds = array<i64: 1, 1, 8>}]} {
    %c0 = arith.constant 0 : index
    %c0_0 = arith.constant 0 : index
    %c0_1 = arith.constant 0 : index
    %0 = vector.load %arg1[%c0, %c0_0, %c0_1] : memref<1x18x72xf32, #tpu.memory_space<vmem>>, vector<1x18x72xf32>
    %1 = vector.shape_cast %0 : vector<1x18x72xf32> to vector<18x72xf32>
    %cst = arith.constant 0.000000e+00 : f32
    %2 = vector.broadcast %cst : f32 to vector<16x128xf32>
    %3 = vector.extract_strided_slice %1 {offsets = [0, 0], sizes = [16, 72], strides = [1, 1]} : vector<18x72xf32> to vector<16x72xf32>
    %c0_2 = arith.constant 0 : index
    %c0_3 = arith.constant 0 : index
    %c0_4 = arith.constant 0 : index
    %4 = vector.load %arg2[%c0_2, %c0_3, %c0_4] : memref<3x72x128xf32, #tpu.memory_space<vmem>>, vector<1x72x128xf32>
    %5 = vector.shape_cast %4 : vector<1x72x128xf32> to vector<72x128xf32>
    %cst_5 = arith.constant dense<0.000000e+00> : vector<16x128xf32>
    %6 = tpu.matmul %3, %5, %cst_5 {dimension_numbers = #tpu.dot_dimension_numbers<[1], [0], [0], [1], [0, 0, 1, 1], [], []>} : vector<16x72xf32>, vector<72x128xf32>, vector<16x128xf32> -> vector<16x128xf32>
    %7 = arith.addf %2, %6 : vector<16x128xf32>
    %8 = vector.extract_strided_slice %1 {offsets = [1, 0], sizes = [16, 72], strides = [1, 1]} : vector<18x72xf32> to vector<16x72xf32>
    %c1 = arith.constant 1 : index
    %c0_6 = arith.constant 0 : index
    %c0_7 = arith.constant 0 : index
    %9 = vector.load %arg2[%c1, %c0_6, %c0_7] : memref<3x72x128xf32, #tpu.memory_space<vmem>>, vector<1x72x128xf32>
    %10 = vector.shape_cast %9 : vector<1x72x128xf32> to vector<72x128xf32>
    %cst_8 = arith.constant dense<0.000000e+00> : vector<16x128xf32>
    %11 = tpu.matmul %8, %10, %cst_8 {dimension_numbers = #tpu.dot_dimension_numbers<[1], [0], [0], [1], [0, 0, 1, 1], [], []>} : vector<16x72xf32>, vector<72x128xf32>, vector<16x128xf32> -> vector<16x128xf32>
    %12 = arith.addf %7, %11 : vector<16x128xf32>
    %13 = vector.extract_strided_slice %1 {offsets = [2, 0], sizes = [16, 72], strides = [1, 1]} : vector<18x72xf32> to vector<16x72xf32>
    %c2 = arith.constant 2 : index
    %c0_9 = arith.constant 0 : index
    %c0_10 = arith.constant 0 : index
    %14 = vector.load %arg2[%c2, %c0_9, %c0_10] : memref<3x72x128xf32, #tpu.memory_space<vmem>>, vector<1x72x128xf32>
    %15 = vector.shape_cast %14 : vector<1x72x128xf32> to vector<72x128xf32>
    %cst_11 = arith.constant dense<0.000000e+00> : vector<16x128xf32>
    %16 = tpu.matmul %13, %15, %cst_11 {dimension_numbers = #tpu.dot_dimension_numbers<[1], [0], [0], [1], [0, 0, 1, 1], [], []>} : vector<16x72xf32>, vector<72x128xf32>, vector<16x128xf32> -> vector<16x128xf32>
    %17 = arith.addf %12, %16 : vector<16x128xf32>
    %c0_12 = arith.constant 0 : index
    %c0_13 = arith.constant 0 : index
    %18 = vector.load %arg3[%c0_12, %c0_13] : memref<1x128xf32, #tpu.memory_space<vmem>>, vector<1x128xf32>
    %19 = vector.broadcast %18 : vector<1x128xf32> to vector<16x128xf32>
    %20 = arith.addf %17, %19 : vector<16x128xf32>
    %c0_14 = arith.constant 0 : index
    %c0_15 = arith.constant 0 : index
    %c0_16 = arith.constant 0 : index
    %21 = vector.load %arg5[%c0_14, %c0_15, %c0_16] : memref<1x16x128xf32, #tpu.memory_space<vmem>>, vector<1x16x128xf32>
    %22 = vector.shape_cast %21 : vector<1x16x128xf32> to vector<16x128xf32>
    %23 = vector.shape_cast %20 : vector<16x128xf32> to vector<1x16x128xf32>
    tpu.vector_store %arg5[%c0_14, %c0_15, %c0_16], %23 {strides = array<i32>} : memref<1x16x128xf32, #tpu.memory_space<vmem>>, vector<1x16x128xf32>,
    %c0_17 = arith.constant 0 : index
    %c0_18 = arith.constant 0 : index
    %24 = vector.load %arg4[%c0_17, %c0_18] : memref<128x8xf32, #tpu.memory_space<vmem>>, vector<128x8xf32>
    %cst_19 = arith.constant dense<0.000000e+00> : vector<16x8xf32>
    %25 = tpu.matmul %20, %24, %cst_19 {dimension_numbers = #tpu.dot_dimension_numbers<[1], [0], [0], [1], [0, 0, 1, 1], [], []>} : vector<16x128xf32>, vector<128x8xf32>, vector<16x8xf32> -> vector<16x8xf32>
    %26 = arith.mulf %20, %20 : vector<16x128xf32>
    %cst_20 = arith.constant dense<0.000000e+00> : vector<16x8xf32>
    %27 = tpu.matmul %26, %24, %cst_20 {dimension_numbers = #tpu.dot_dimension_numbers<[1], [0], [0], [1], [0, 0, 1, 1], [], []>} : vector<16x128xf32>, vector<128x8xf32>, vector<16x8xf32> -> vector<16x8xf32>
    %cst_21 = arith.constant dense<0.000000e+00> : vector<8xf32>
    %28 = vector.multi_reduction <add>, %25, %cst_21 [0] : vector<16x8xf32> to vector<8xf32>
    %29 = vector.shape_cast %28 : vector<8xf32> to vector<1x8xf32>
    %c0_22 = arith.constant 0 : index
    %c0_23 = arith.constant 0 : index
    %c0_24 = arith.constant 0 : index
    %30 = vector.load %arg6[%c0_22, %c0_23, %c0_24] : memref<1x1x8xf32, #tpu.memory_space<vmem>>, vector<1x1x8xf32>
    %31 = vector.shape_cast %30 : vector<1x1x8xf32> to vector<1x8xf32>
    %32 = vector.shape_cast %29 : vector<1x8xf32> to vector<1x1x8xf32>
    tpu.vector_store %arg6[%c0_22, %c0_23, %c0_24], %32 {strides = array<i32>} : memref<1x1x8xf32, #tpu.memory_space<vmem>>, vector<1x1x8xf32>,
    %cst_25 = arith.constant dense<0.000000e+00> : vector<8xf32>
    %33 = vector.multi_reduction <add>, %27, %cst_25 [0] : vector<16x8xf32> to vector<8xf32>
    %34 = vector.shape_cast %33 : vector<8xf32> to vector<1x8xf32>
    %c0_26 = arith.constant 0 : index
    %c0_27 = arith.constant 0 : index
    %c0_28 = arith.constant 0 : index
    %35 = vector.load %arg7[%c0_26, %c0_27, %c0_28] : memref<1x1x8xf32, #tpu.memory_space<vmem>>, vector<1x1x8xf32>
    %36 = vector.shape_cast %35 : vector<1x1x8xf32> to vector<1x8xf32>
    %37 = vector.shape_cast %34 : vector<1x8xf32> to vector<1x1x8xf32>
    tpu.vector_store %arg7[%c0_26, %c0_27, %c0_28], %37 {strides = array<i32>} : memref<1x1x8xf32, #tpu.memory_space<vmem>>, vector<1x1x8xf32>,
    return
  }
  func.func @transform_0(%arg0: i32) -> (i32, i32, i32) {
    %c0_i32 = arith.constant 0 : i32
    %c0_i32_0 = arith.constant 0 : i32
    %c0_i32_1 = arith.constant 0 : i32
    return %arg0, %c0_i32, %c0_i32_0 : i32, i32, i32
  }
  func.func @transform_1(%arg0: i32) -> (i32, i32, i32) {
    %c0_i32 = arith.constant 0 : i32
    %c0_i32_0 = arith.constant 0 : i32
    %c0_i32_1 = arith.constant 0 : i32
    %c0_i32_2 = arith.constant 0 : i32
    return %c0_i32, %c0_i32_0, %c0_i32_1 : i32, i32, i32
  }
  func.func @transform_2(%arg0: i32) -> (i32, i32) {
    %c0_i32 = arith.constant 0 : i32
    %c0_i32_0 = arith.constant 0 : i32
    %c0_i32_1 = arith.constant 0 : i32
    return %c0_i32, %c0_i32_0 : i32, i32
  }
  func.func @transform_3(%arg0: i32) -> (i32, i32) {
    %c0_i32 = arith.constant 0 : i32
    %c0_i32_0 = arith.constant 0 : i32
    %c0_i32_1 = arith.constant 0 : i32
    return %c0_i32, %c0_i32_0 : i32, i32
  }
  func.func @transform_4(%arg0: i32) -> (i32, i32, i32) {
    %c0_i32 = arith.constant 0 : i32
    %c0_i32_0 = arith.constant 0 : i32
    %c0_i32_1 = arith.constant 0 : i32
    return %arg0, %c0_i32, %c0_i32_0 : i32, i32, i32
  }
  func.func @transform_5(%arg0: i32) -> (i32, i32, i32) {
    %c0_i32 = arith.constant 0 : i32
    %c0_i32_0 = arith.constant 0 : i32
    %c0_i32_1 = arith.constant 0 : i32
    return %arg0, %c0_i32, %c0_i32_0 : i32, i32, i32
  }
  func.func @transform_6(%arg0: i32) -> (i32, i32, i32) {
    %c0_i32 = arith.constant 0 : i32
    %c0_i32_0 = arith.constant 0 : i32
    %c0_i32_1 = arith.constant 0 : i32
    return %arg0, %c0_i32, %c0_i32_0 : i32, i32, i32
  }
}

module attributes {stable_mosaic.version = 11 : i64} {
  func.func @bn_act_kernel(%arg0: i32, %arg1: i32, %arg2: memref<1x8x128xf32, #tpu.memory_space<vmem>>, %arg3: memref<1x1x128xf32, #tpu.memory_space<vmem>>, %arg4: memref<1x1x128xf32, #tpu.memory_space<vmem>>, %arg5: memref<1x8x128xf32, #tpu.memory_space<vmem>>) attributes {dimension_semantics = [#tpu.dimension_semantics<parallel>, #tpu.dimension_semantics<parallel>], iteration_bounds = array<i64: 2, 2>, scalar_prefetch = 0 : i64, scratch_operands = 0 : i64, tpu.core_type = #tpu.core_type<tc>, window_params = [{transform_indices = @transform_0, window_bounds = array<i64: 1, 8, 128>}, {pipeline_mode = #tpu.pipeline_mode<synchronous>, transform_indices = @transform_1, window_bounds = array<i64: 1, 1, 128>}, {pipeline_mode = #tpu.pipeline_mode<synchronous>, transform_indices = @transform_2, window_bounds = array<i64: 1, 1, 128>}, {transform_indices = @transform_3, window_bounds = array<i64: 1, 8, 128>}]} {
    %c0 = arith.constant 0 : index
    %c0_0 = arith.constant 0 : index
    %c0_1 = arith.constant 0 : index
    %0 = vector.load %arg2[%c0, %c0_0, %c0_1] : memref<1x8x128xf32, #tpu.memory_space<vmem>>, vector<1x8x128xf32>
    %c0_2 = arith.constant 0 : index
    %c0_3 = arith.constant 0 : index
    %c0_4 = arith.constant 0 : index
    %1 = vector.load %arg3[%c0_2, %c0_3, %c0_4] : memref<1x1x128xf32, #tpu.memory_space<vmem>>, vector<1x1x128xf32>
    %2 = vector.broadcast %1 : vector<1x1x128xf32> to vector<1x8x128xf32>
    %3 = arith.mulf %0, %2 : vector<1x8x128xf32>
    %c0_5 = arith.constant 0 : index
    %c0_6 = arith.constant 0 : index
    %c0_7 = arith.constant 0 : index
    %4 = vector.load %arg4[%c0_5, %c0_6, %c0_7] : memref<1x1x128xf32, #tpu.memory_space<vmem>>, vector<1x1x128xf32>
    %5 = vector.broadcast %4 : vector<1x1x128xf32> to vector<1x8x128xf32>
    %6 = arith.addf %3, %5 : vector<1x8x128xf32>
    %cst = arith.constant 0.000000e+00 : f32
    %7 = vector.broadcast %cst : f32 to vector<1x8x128xf32>
    %8 = arith.maximumf %6, %7 : vector<1x8x128xf32>
    %c0_8 = arith.constant 0 : index
    %c0_9 = arith.constant 0 : index
    %c0_10 = arith.constant 0 : index
    %9 = vector.load %arg5[%c0_8, %c0_9, %c0_10] : memref<1x8x128xf32, #tpu.memory_space<vmem>>, vector<1x8x128xf32>
    tpu.vector_store %arg5[%c0_8, %c0_9, %c0_10], %8 {strides = array<i32>} : memref<1x8x128xf32, #tpu.memory_space<vmem>>, vector<1x8x128xf32>,
    return
  }
  func.func @transform_0(%arg0: i32, %arg1: i32) -> (i32, i32, i32) {
    %c0_i32 = arith.constant 0 : i32
    %c0_i32_0 = arith.constant 0 : i32
    return %arg0, %arg1, %c0_i32 : i32, i32, i32
  }
  func.func @transform_1(%arg0: i32, %arg1: i32) -> (i32, i32, i32) {
    %c0_i32 = arith.constant 0 : i32
    %c0_i32_0 = arith.constant 0 : i32
    %c0_i32_1 = arith.constant 0 : i32
    %c0_i32_2 = arith.constant 0 : i32
    return %c0_i32, %c0_i32_0, %c0_i32_1 : i32, i32, i32
  }
  func.func @transform_2(%arg0: i32, %arg1: i32) -> (i32, i32, i32) {
    %c0_i32 = arith.constant 0 : i32
    %c0_i32_0 = arith.constant 0 : i32
    %c0_i32_1 = arith.constant 0 : i32
    %c0_i32_2 = arith.constant 0 : i32
    return %c0_i32, %c0_i32_0, %c0_i32_1 : i32, i32, i32
  }
  func.func @transform_3(%arg0: i32, %arg1: i32) -> (i32, i32, i32) {
    %c0_i32 = arith.constant 0 : i32
    %c0_i32_0 = arith.constant 0 : i32
    return %arg0, %arg1, %c0_i32 : i32, i32, i32
  }
}

</mosaic_0001>

<llo_original>
// kernel: tile.18
$region0: #{tile.18}
  #allocation0 [shape = 's32[1]{0}', space=sflag, size = 0x4, scoped, tag = 'scoped memory for tile.18']
  %s0 = inlined_call_operand.vmem [shape: f32[8], index: 0, kind: input, shape index: {}]
  %s1 = inlined_call_operand.vmem [shape: f32[16,8], index: 1, kind: output, shape index: {}]
  // Predicated region
  $region2: #{tile.18} parent=0 // pred_check
    _
  $region3: #{tile.18} parent=0 // pred_check_branch
    %3 = sbr.rel (0) target = $region5
  $region4: #{tile.18} parent=0 // pred_region
    _
  $region5: #{tile.18} parent=0 // pred_fallthru
    _
  %v4 = vld [vmem:[%s0] ss:$0 sm:$0xff]
  %5 = vst [vmem:[%s1] sm:$0xff] %v4
  %s6 = scalar_lea.vmem %s1, 8
  %7 = vst [vmem:[%s6] sm:$0xff] %v4

// kernel: tile.19
$region0: #{tile.19}
  %s0 = inlined_call_operand.vmem [shape: f32[16,8], index: 0, kind: input, shape index: {}]
  %s1 = inlined_call_operand.vmem [shape: f32[1,128], index: 1, kind: output, shape index: {}]
  $region1: #{tile.19} parent=0
    #allocation0 [shape = 'u8[4096]{0}', space=vmem, size = 0x1000, scoped, tag = 'scoped mem for output reshape']
    %v2 = vld [vmem:[%s0] sm:$0x1]
    %vm3 = vcmask 64512
    %4 = vst.msk [vmem:[#allocation0] sm:$0x1] %vm3, %v2
    %s5 = scalar_lea.vmem %s0, 15
    %v6 = vld [vmem:[%s5] sm:$0x1]
    %7 = vrot.lane.b32.xlu0 %v6, 120
    %v8 = vpop.permute.xlu0 %7
    %vm9 = vcmask 1048512
    %10 = vst.msk [vmem:[#allocation0] sm:$0x1] %vm9, %v8
    %s11 = scalar_lea.vmem %s0, 14
    %v12 = vld [vmem:[%s11] sm:$0x1]
    %13 = vrot.lane.b32.xlu0 %v12, 112
    %v14 = vpop.permute.xlu0 %13
    %vm15 = vcmask 982912
    %16 = vst.msk [vmem:[#allocation0] sm:$0x1] %vm15, %v14
    %s17 = scalar_lea.vmem %s0, 13
    %v18 = vld [vmem:[%s17] sm:$0x1]
    %19 = vrot.lane.b32.xlu0 %v18, 104
    %v20 = vpop.permute.xlu0 %19
    %vm21 = vcmask 917312
    %22 = vst.msk [vmem:[#allocation0] sm:$0x1] %vm21, %v20
    %s23 = scalar_lea.vmem %s0, 12
    %v24 = vld [vmem:[%s23] sm:$0x1]
    %25 = vrot.lane.b32.xlu0 %v24, 96
    %v26 = vpop.permute.xlu0 %25
    %vm27 = vcmask 851712
    %28 = vst.msk [vmem:[#allocation0] sm:$0x1] %vm27, %v26
    %s29 = scalar_lea.vmem %s0, 11
    %v30 = vld [vmem:[%s29] sm:$0x1]
    %31 = vrot.lane.b32.xlu0 %v30, 88
    %v32 = vpop.permute.xlu0 %31
    %vm33 = vcmask 786112
    %34 = vst.msk [vmem:[#allocation0] sm:$0x1] %vm33, %v32
    %s35 = scalar_lea.vmem %s0, 10
    %v36 = vld [vmem:[%s35] sm:$0x1]
    %37 = vrot.lane.b32.xlu0 %v36, 80
    %v38 = vpop.permute.xlu0 %37
    %vm39 = vcmask 720512
    %40 = vst.msk [vmem:[#allocation0] sm:$0x1] %vm39, %v38
    %s41 = scalar_lea.vmem %s0, 9
    %v42 = vld [vmem:[%s41] sm:$0x1]
    %43 = vrot.lane.b32.xlu0 %v42, 72
    %v44 = vpop.permute.xlu0 %43
    %vm45 = vcmask 654912
    %46 = vst.msk [vmem:[#allocation0] sm:$0x1] %vm45, %v44
    %s47 = scalar_lea.vmem %s0, 8
    %v48 = vld [vmem:[%s47] sm:$0x1]
    %49 = vrot.lane.b32.xlu0 %v48, 64
    %v50 = vpop.permute.xlu0 %49
    %vm51 = vcmask 589312
    %52 = vst.msk [vmem:[#allocation0] sm:$0x1] %vm51, %v50
    %s53 = scalar_lea.vmem %s0, 7
    %v54 = vld [vmem:[%s53] sm:$0x1]
    %55 = vrot.lane.b32.xlu0 %v54, 56
    %v56 = vpop.permute.xlu0 %55
    %vm57 = vcmask 523712
    %58 = vst.msk [vmem:[#allocation0] sm:$0x1] %vm57, %v56
    %s59 = scalar_lea.vmem %s0, 6
    %v60 = vld [vmem:[%s59] sm:$0x1]
    %61 = vrot.lane.b32.xlu0 %v60, 48
    %v62 = vpop.permute.xlu0 %61
    %vm63 = vcmask 458112
    %64 = vst.msk [vmem:[#allocation0] sm:$0x1] %vm63, %v62
    %s65 = scalar_lea.vmem %s0, 5
    %v66 = vld [vmem:[%s65] sm:$0x1]
    %67 = vrot.lane.b32.xlu0 %v66, 40
    %v68 = vpop.permute.xlu0 %67
    %vm69 = vcmask 392512
    %70 = vst.msk [vmem:[#allocation0] sm:$0x1] %vm69, %v68
    %s71 = scalar_lea.vmem %s0, 4
    %v72 = vld [vmem:[%s71] sm:$0x1]
    %73 = vrot.lane.b32.xlu0 %v72, 32
    %v74 = vpop.permute.xlu0 %73
    %vm75 = vcmask 326912
    %76 = vst.msk [vmem:[#allocation0] sm:$0x1] %vm75, %v74
    %s77 = scalar_lea.vmem %s0, 3
    %v78 = vld [vmem:[%s77] sm:$0x1]
    %79 = vrot.lane.b32.xlu0 %v78, 24
    %v80 = vpop.permute.xlu0 %79
    %vm81 = vcmask 261312
    %82 = vst.msk [vmem:[#allocation0] sm:$0x1] %vm81, %v80
    %s83 = scalar_lea.vmem %s0, 2
    %v84 = vld [vmem:[%s83] sm:$0x1]
    %85 = vrot.lane.b32.xlu0 %v84, 16
    %v86 = vpop.permute.xlu0 %85
    %vm87 = vcmask 195712
    %88 = vst.msk [vmem:[#allocation0] sm:$0x1] %vm87, %v86
    %s89 = scalar_lea.vmem %s0, 1
    %v90 = vld [vmem:[%s89] sm:$0x1]
    %91 = vrot.lane.b32.xlu0 %v90, 8
    %v92 = vpop.permute.xlu0 %91
    %vm93 = vcmask 130112
    %94 = vst.msk [vmem:[#allocation0] sm:$0x1] %vm93, %v92
    %s96 = sshllo.u32 0, 1
    %v98 = vld [vmem:[#allocation0] sm:%s96]
    %s99 = sshllo.u32 0, 1
    %100 = vst [vmem:[%s1] sm:%s99] %v98

// kernel: tile.24
$region0: #{tile.24}
  %s0 = inlined_call_operand.vmem [shape: f32[16,8], index: 0, kind: input, shape index: {}]
  %s1 = inlined_call_operand.vmem [shape: f32[1,1,128], index: 1, kind: output, shape index: {}]
  $region1: #{tile.24} parent=0
    #allocation0 [shape = 'u8[4096]{0}', space=vmem, size = 0x1000, scoped, tag = 'scoped mem for output reshape']
    %v2 = vld [vmem:[%s0] sm:$0x1]
    %vm3 = vcmask 64512
    %4 = vst.msk [vmem:[#allocation0] sm:$0x1] %vm3, %v2
    %s5 = scalar_lea.vmem %s0, 15
    %v6 = vld [vmem:[%s5] sm:$0x1]
    %7 = vrot.lane.b32.xlu0 %v6, 120
    %v8 = vpop.permute.xlu0 %7
    %vm9 = vcmask 1048512
    %10 = vst.msk [vmem:[#allocation0] sm:$0x1] %vm9, %v8
    %s11 = scalar_lea.vmem %s0, 14
    %v12 = vld [vmem:[%s11] sm:$0x1]
    %13 = vrot.lane.b32.xlu0 %v12, 112
    %v14 = vpop.permute.xlu0 %13
    %vm15 = vcmask 982912
    %16 = vst.msk [vmem:[#allocation0] sm:$0x1] %vm15, %v14
    %s17 = scalar_lea.vmem %s0, 13
    %v18 = vld [vmem:[%s17] sm:$0x1]
    %19 = vrot.lane.b32.xlu0 %v18, 104
    %v20 = vpop.permute.xlu0 %19
    %vm21 = vcmask 917312
    %22 = vst.msk [vmem:[#allocation0] sm:$0x1] %vm21, %v20
    %s23 = scalar_lea.vmem %s0, 12
    %v24 = vld [vmem:[%s23] sm:$0x1]
    %25 = vrot.lane.b32.xlu0 %v24, 96
    %v26 = vpop.permute.xlu0 %25
    %vm27 = vcmask 851712
    %28 = vst.msk [vmem:[#allocation0] sm:$0x1] %vm27, %v26
    %s29 = scalar_lea.vmem %s0, 11
    %v30 = vld [vmem:[%s29] sm:$0x1]
    %31 = vrot.lane.b32.xlu0 %v30, 88
    %v32 = vpop.permute.xlu0 %31
    %vm33 = vcmask 786112
    %34 = vst.msk [vmem:[#allocation0] sm:$0x1] %vm33, %v32
    %s35 = scalar_lea.vmem %s0, 10
    %v36 = vld [vmem:[%s35] sm:$0x1]
    %37 = vrot.lane.b32.xlu0 %v36, 80
    %v38 = vpop.permute.xlu0 %37
    %vm39 = vcmask 720512
    %40 = vst.msk [vmem:[#allocation0] sm:$0x1] %vm39, %v38
    %s41 = scalar_lea.vmem %s0, 9
    %v42 = vld [vmem:[%s41] sm:$0x1]
    %43 = vrot.lane.b32.xlu0 %v42, 72
    %v44 = vpop.permute.xlu0 %43
    %vm45 = vcmask 654912
    %46 = vst.msk [vmem:[#allocation0] sm:$0x1] %vm45, %v44
    %s47 = scalar_lea.vmem %s0, 8
    %v48 = vld [vmem:[%s47] sm:$0x1]
    %49 = vrot.lane.b32.xlu0 %v48, 64
    %v50 = vpop.permute.xlu0 %49
    %vm51 = vcmask 589312
    %52 = vst.msk [vmem:[#allocation0] sm:$0x1] %vm51, %v50
    %s53 = scalar_lea.vmem %s0, 7
    %v54 = vld [vmem:[%s53] sm:$0x1]
    %55 = vrot.lane.b32.xlu0 %v54, 56
    %v56 = vpop.permute.xlu0 %55
    %vm57 = vcmask 523712
    %58 = vst.msk [vmem:[#allocation0] sm:$0x1] %vm57, %v56
    %s59 = scalar_lea.vmem %s0, 6
    %v60 = vld [vmem:[%s59] sm:$0x1]
    %61 = vrot.lane.b32.xlu0 %v60, 48
    %v62 = vpop.permute.xlu0 %61
    %vm63 = vcmask 458112
    %64 = vst.msk [vmem:[#allocation0] sm:$0x1] %vm63, %v62
    %s65 = scalar_lea.vmem %s0, 5
    %v66 = vld [vmem:[%s65] sm:$0x1]
    %67 = vrot.lane.b32.xlu0 %v66, 40
    %v68 = vpop.permute.xlu0 %67
    %vm69 = vcmask 392512
    %70 = vst.msk [vmem:[#allocation0] sm:$0x1] %vm69, %v68
    %s71 = scalar_lea.vmem %s0, 4
    %v72 = vld [vmem:[%s71] sm:$0x1]
    %73 = vrot.lane.b32.xlu0 %v72, 32
    %v74 = vpop.permute.xlu0 %73
    %vm75 = vcmask 326912
    %76 = vst.msk [vmem:[#allocation0] sm:$0x1] %vm75, %v74
    %s77 = scalar_lea.vmem %s0, 3
    %v78 = vld [vmem:[%s77] sm:$0x1]
    %79 = vrot.lane.b32.xlu0 %v78, 24
    %v80 = vpop.permute.xlu0 %79
    %vm81 = vcmask 261312
    %82 = vst.msk [vmem:[#allocation0] sm:$0x1] %vm81, %v80
    %s83 = scalar_lea.vmem %s0, 2
    %v84 = vld [vmem:[%s83] sm:$0x1]
    %85 = vrot.lane.b32.xlu0 %v84, 16
    %v86 = vpop.permute.xlu0 %85
    %vm87 = vcmask 195712
    %88 = vst.msk [vmem:[#allocation0] sm:$0x1] %vm87, %v86
    %s89 = scalar_lea.vmem %s0, 1
    %v90 = vld [vmem:[%s89] sm:$0x1]
    %91 = vrot.lane.b32.xlu0 %v90, 8
    %v92 = vpop.permute.xlu0 %91
    %vm93 = vcmask 130112
    %94 = vst.msk [vmem:[#allocation0] sm:$0x1] %vm93, %v92
    %s96 = sshllo.u32 0, 1
    %v98 = vld [vmem:[#allocation0] sm:%s96]
    %s99 = sshllo.u32 0, 1
    %100 = vst [vmem:[%s1] sm:%s99] %v98

// kernel: one_conv_forward.3
$region0: #{one_conv_forward.3}
  #allocation0 [shape = 'u32[]', space=smem, size = 0x4, offset = 0x4, fixed_abs, tag = 'smem constant byte address 0x4 - core index']
  #allocation1 [shape = 'u32[144,128]{1,0:T(1,128)}', space=vmem, size = 0x12000, scoped, tag = 'internal scratch']
  %s0 = inlined_call_operand.vmem [shape: f32[2,16,128], index: 0, kind: input, shape index: {}]
  %s1 = inlined_call_operand.vmem [shape: f32[1,1,128], index: 1, kind: input, shape index: {}]
  %s2 = inlined_call_operand.vmem [shape: f32[1,1,128], index: 2, kind: input, shape index: {}]
  %s3 = inlined_call_operand.vmem [shape: f32[2,16,128], index: 3, kind: output, shape index: {}]
  %s4 = sld [smem:[#allocation0]]
  $region45: #{one_conv_forward.3} parent=0
    _
  %s6 = ssub.s32 1, %s4
  %s7 = scalar_select 0, %s6, %s4
  loop: start=0, step=1, limit=6
  $region2: #{one_conv_forward.3} parent=0 // loop_pre_header
    _
  $region3: #{one_conv_forward.3} parent=0 // loop_header
    %s9 = sphi 0, %s13
    %p10 = scmp.ge.s32.totalorder %s9, 6
    %s16 = sphi 0, %s28
    %s17 = sphi 0, %s24
    %s18 = sphi 0, %s16
    %s19 = sphi 0, %s17
    %s20 = sphi 0, %s18
    %s21 = sphi 0, %s19
    %s33 = sphi 0, %s35
    %s36 = sphi 0, %s33
    %s37 = sphi 0, %s36
    %s53 = sphi 0, %s37
    %s57 = sphi 0, %s57
    %s59 = sphi 0, %s57
    %s60 = sphi 0, %s59
    %s74 = sphi 0, %s60
    %s78 = sphi 0, %s78
    %s80 = sphi 0, %s78
    %s81 = sphi 0, %s80
    %s95 = sphi 0, %s81
    %s103 = sphi 0, %s105
    %s106 = sphi 0, %s103
    %s107 = sphi 0, %s106
    %s123 = sphi 0, %s107
  $region4: #{one_conv_forward.3} parent=0 // loop_header_branch
    %12 = sbr.rel (%p10) target = $region8
  $region5: #{one_conv_forward.3} parent=0 // loop_body
    %s14 = ssub.s32 %s9, 1
    %s15 = ssub.s32 %s9, 2
    %s22 = sadd.s32 1, %s17
    %p23 = scmp.ge.s32.totalorder %s22, 2
    %s24 = scalar_select %p23, 0, %s22
    %s25 = sadd.s32 1, %s16
    %s26 = scalar_select %p23, %s25, %s16
    %p27 = scmp.ge.s32.totalorder %s26, 2
    %s28 = scalar_select %p27, 0, %s26
    %s29 = ssub.s32 %s16, %s28
    %s30 = ssub.s32 %s17, %s24
    %s31 = sor.u32 %s29, %s30
    %p32 = scmp.eq.s32.totalorder %s31, 0
    %s34 = sadd.s32 %s33, 1
    %s35 = scalar_select %p32, %s33, %s34
    %p38 = pneg %p32
    %p39 = scmp.eq.s32.totalorder %s9, 3
    %p40 = por %p38, %p39
    %p41 = scmp.ne.s32.totalorder %s33, %s36
    %p42 = scmp.eq.s32.totalorder %s9, 0
    %p43 = por %p41, %p42
    %p44 = scmp.ne.s32.totalorder %s33, %s36
    %p45 = scmp.eq.s32.totalorder %s14, 3
    %p46 = por %p44, %p45
    %p47 = scmp.ne.s32.totalorder %s36, %s37
    %p48 = scmp.eq.s32.totalorder %s14, 0
    %p49 = por %p47, %p48
    %p50 = scmp.ne.s32.totalorder %s36, %s37
    %p51 = scmp.eq.s32.totalorder %s15, 3
    %p52 = por %p50, %p51
    %p54 = scmp.ne.s32.totalorder %s37, %s53
    %p55 = scmp.eq.s32.totalorder %s15, 0
    %p56 = por %p54, %p55
    %s58 = sadd.s32 %s57, 1
    %p61 = scmp.eq.s32.totalorder %s9, 3
    %p62 = scmp.ne.s32.totalorder %s57, %s59
    %p63 = scmp.eq.s32.totalorder %s9, 0
    %p64 = por %p62, %p63
    %p65 = scmp.ne.s32.totalorder %s57, %s59
    %p66 = scmp.eq.s32.totalorder %s14, 3
    %p67 = por %p65, %p66
    %p68 = scmp.ne.s32.totalorder %s59, %s60
    %p69 = scmp.eq.s32.totalorder %s14, 0
    %p70 = por %p68, %p69
    %p71 = scmp.ne.s32.totalorder %s59, %s60
    %p72 = scmp.eq.s32.totalorder %s15, 3
    %p73 = por %p71, %p72
    %p75 = scmp.ne.s32.totalorder %s60, %s74
    %p76 = scmp.eq.s32.totalorder %s15, 0
    %p77 = por %p75, %p76
    %s79 = sadd.s32 %s78, 1
    %p82 = scmp.eq.s32.totalorder %s9, 3
    %p83 = scmp.ne.s32.totalorder %s78, %s80
    %p84 = scmp.eq.s32.totalorder %s9, 0
    %p85 = por %p83, %p84
    %p86 = scmp.ne.s32.totalorder %s78, %s80
    %p87 = scmp.eq.s32.totalorder %s14, 3
    %p88 = por %p86, %p87
    %p89 = scmp.ne.s32.totalorder %s80, %s81
    %p90 = scmp.eq.s32.totalorder %s14, 0
    %p91 = por %p89, %p90
    %p92 = scmp.ne.s32.totalorder %s80, %s81
    %p93 = scmp.eq.s32.totalorder %s15, 3
    %p94 = por %p92, %p93
    %p96 = scmp.ne.s32.totalorder %s81, %s95
    %p97 = scmp.eq.s32.totalorder %s15, 0
    %p98 = por %p96, %p97
    %s99 = ssub.s32 %s16, %s28
    %s100 = ssub.s32 %s17, %s24
    %s101 = sor.u32 %s99, %s100
    %p102 = scmp.eq.s32.totalorder %s101, 0
    %s104 = sadd.s32 %s103, 1
    %s105 = scalar_select %p102, %s103, %s104
    %p108 = pneg %p102
    %p109 = scmp.eq.s32.totalorder %s9, 3
    %p110 = por %p108, %p109
    %p111 = scmp.ne.s32.totalorder %s103, %s106
    %p112 = scmp.eq.s32.totalorder %s9, 0
    %p113 = por %p111, %p112
    %p114 = scmp.ne.s32.totalorder %s103, %s106
    %p115 = scmp.eq.s32.totalorder %s14, 3
    %p116 = por %p114, %p115
    %p117 = scmp.ne.s32.totalorder %s106, %s107
    %p118 = scmp.eq.s32.totalorder %s14, 0
    %p119 = por %p117, %p118
    %p120 = scmp.ne.s32.totalorder %s106, %s107
    %p121 = scmp.eq.s32.totalorder %s15, 3
    %p122 = por %p120, %p121
    %p124 = scmp.ne.s32.totalorder %s107, %s123
    %p125 = scmp.eq.s32.totalorder %s15, 0
    %p126 = por %p124, %p125
    %p127 = scmp.le.s32.totalorder 1, %s9
    %p128 = scmp.lt.s32.totalorder %s9, 5
    %p129 = pnand %p127, %p128
    %p130 = pneg %p129
    // Predicated region
    $region9: #{one_conv_forward.3} parent=5 // pred_check
      _
    $region10: #{one_conv_forward.3} parent=5 // pred_check_branch
      %132 = sbr.rel (%p129) target = $region12
    $region11: #{one_conv_forward.3} parent=5 // pred_region
      %s133 = ssub.s32 %s9, 1
      // Predicated region
      $region13: #{one_conv_forward.3} parent=11 // pred_check
        %p134 = pneg %p70
      $region14: #{one_conv_forward.3} parent=11 // pred_check_branch
        %136 = sbr.rel (%p134) target = $region16
      $region15: #{one_conv_forward.3} parent=11 // pred_region
        _
      $region16: #{one_conv_forward.3} parent=11 // pred_fallthru
        _
      // Predicated region
      $region17: #{one_conv_forward.3} parent=11 // pred_check
        %p137 = pneg %p91
      $region18: #{one_conv_forward.3} parent=11 // pred_check_branch
        %139 = sbr.rel (%p137) target = $region20
      $region19: #{one_conv_forward.3} parent=11 // pred_region
        _
      $region20: #{one_conv_forward.3} parent=11 // pred_fallthru
        _
    $region12: #{one_conv_forward.3} parent=5 // pred_fallthru
      _
    %p140 = scmp.lt.s32.totalorder %s9, 4
    // Predicated region
    $region21: #{one_conv_forward.3} parent=5 // pred_check
      %p141 = pneg %p140
    $region22: #{one_conv_forward.3} parent=5 // pred_check_branch
      %143 = sbr.rel (%p141) target = $region24
    $region23: #{one_conv_forward.3} parent=5 // pred_region
      // Predicated region
      $region25: #{one_conv_forward.3} parent=23 // pred_check
        %p144 = pneg %p43
      $region26: #{one_conv_forward.3} parent=23 // pred_check_branch
        %146 = sbr.rel (%p144) target = $region28
      $region27: #{one_conv_forward.3} parent=23 // pred_region
        %p147 = scmp.lt.s32.totalorder %s16, 1
        %s148 = scalar_select %p147, %s16, 1
        %p149 = scmp.lt.s32.totalorder %s17, 1
        %s150 = scalar_select %p149, %s17, 1
        %s151 = smul.addr %s148, 2
        %s152 = sadd.s32 %s150, %s151
        %s153 = smul.addr %s152, 8
        %s154 = scalar_lea.vmem %s0, %s153
      $region28: #{one_conv_forward.3} parent=23 // pred_fallthru
        _
    $region24: #{one_conv_forward.3} parent=5 // pred_fallthru
      _
    %p155 = scmp.le.s32.totalorder 1, %s9
    %p156 = scmp.lt.s32.totalorder %s9, 5
    %p157 = pnand %p155, %p156
    %p158 = pneg %p157
    // Predicated region
    $region29: #{one_conv_forward.3} parent=5 // pred_check
      _
    $region30: #{one_conv_forward.3} parent=5 // pred_check_branch
      %160 = sbr.rel (%p157) target = $region32
    $region31: #{one_conv_forward.3} parent=5 // pred_region
      %s161 = ssub.s32 %s9, 1
      %p162 = scmp.lt.s32.totalorder %s18, 1
      %s163 = scalar_select %p162, %s18, 1
      %p164 = scmp.lt.s32.totalorder %s19, 1
      %s165 = scalar_select %p164, %s19, 1
      %s166 = smul.addr %s163, 2
      %s167 = sadd.s32 %s165, %s166
      %s168 = smul.addr %s167, 8
      %s169 = scalar_lea.vmem %s0, %s168
      %p170 = pneg %p49
      %p171 = pneg %p46
      %p172 = pneg %p70
      %p173 = pneg %p67
      %p174 = pneg %p91
      %p175 = pneg %p88
      %p176 = pneg %p119
      %p177 = pneg %p116
      %p178 = scmp.lt.s32.totalorder %s18, 1
      %s179 = scalar_select %p178, %s18, 1
      %p180 = scmp.lt.s32.totalorder %s19, 1
      %s181 = scalar_select %p180, %s19, 1
      %s182 = smul.addr %s179, 2
      %s183 = sadd.s32 %s181, %s182
      %s184 = smul.addr %s183, 8
      %s185 = scalar_lea.vmem %s3, %s184
      %p186 = scmp.lt.s32.totalorder %s18, 1
      %s187 = scalar_select %p186, %s18, 1
      %p188 = scmp.lt.s32.totalorder %s19, 1
      %s189 = scalar_select %p188, %s19, 1
      %s190 = smul.addr %s187, 2
      %s191 = sadd.s32 %s189, %s190
      %s192 = smul.addr %s191, 8
      %s193 = scalar_lea.vmem %s0, %s192
      %p194 = scmp.lt.s32.totalorder %s18, 1
      %s195 = scalar_select %p194, %s18, 1
      %p196 = scmp.lt.s32.totalorder %s19, 1
      %s197 = scalar_select %p196, %s19, 1
      %s198 = smul.addr %s195, 2
      %s199 = sadd.s32 %s197, %s198
      %s200 = smul.addr %s199, 8
      %s201 = scalar_lea.vmem %s3, %s200
      %v202 = vld [vmem:[%s193] sm:$0xff]
      %v203 = vld [vmem:[%s1] sm:$0x1]
      %v205 = vlaneseq
      %v206 = vshrl.u32 %v205, 7
      %v207 = vsub.s32 0, %v206
      %v208 = vrot.slane %v203, %v207
      %v210 = vmul.f32 %v202, %v208
      %v211 = vld [vmem:[%s2] sm:$0x1]
      %v213 = vlaneseq
      %v214 = vshrl.u32 %v213, 7
      %v215 = vsub.s32 0, %v214
      %v216 = vrot.slane %v211, %v215
      %v218 = vadd.f32 %v210, %v216
      %v219 = vmax.f32 %v218, 0.0
      %220 = vst [vmem:[%s201] sm:$0xff] %v219
      %p221 = scmp.lt.s32.totalorder %s18, 1
      %s222 = scalar_select %p221, %s18, 1
      %p223 = scmp.lt.s32.totalorder %s19, 1
      %s224 = scalar_select %p223, %s19, 1
      %s225 = smul.addr %s222, 2
      %s226 = sadd.s32 %s224, %s225
      %s227 = smul.addr %s226, 8
      %s228 = scalar_lea.vmem %s3, %s227
      // Predicated region
      $region33: #{one_conv_forward.3} parent=31 // pred_check
        %p229 = pneg %p116
      $region34: #{one_conv_forward.3} parent=31 // pred_check_branch
        %231 = sbr.rel (%p229) target = $region36
      $region35: #{one_conv_forward.3} parent=31 // pred_region
        _
      $region36: #{one_conv_forward.3} parent=31 // pred_fallthru
        _
    $region32: #{one_conv_forward.3} parent=5 // pred_fallthru
      _
    %p232 = scmp.le.s32.totalorder 2, %s9
    // Predicated region
    $region37: #{one_conv_forward.3} parent=5 // pred_check
      %p233 = pneg %p232
    $region38: #{one_conv_forward.3} parent=5 // pred_check_branch
      %235 = sbr.rel (%p233) target = $region40
    $region39: #{one_conv_forward.3} parent=5 // pred_region
      %s236 = ssub.s32 %s9, 2
      // Predicated region
      $region41: #{one_conv_forward.3} parent=39 // pred_check
        %p237 = pneg %p122
      $region42: #{one_conv_forward.3} parent=39 // pred_check_branch
        %239 = sbr.rel (%p237) target = $region44
      $region43: #{one_conv_forward.3} parent=39 // pred_region
        %p240 = scmp.lt.s32.totalorder %s20, 1
        %s241 = scalar_select %p240, %s20, 1
        %p242 = scmp.lt.s32.totalorder %s21, 1
        %s243 = scalar_select %p242, %s21, 1
        %s244 = smul.addr %s241, 2
        %s245 = sadd.s32 %s243, %s244
        %s246 = smul.addr %s245, 8
        %s247 = scalar_lea.vmem %s3, %s246
      $region44: #{one_conv_forward.3} parent=39 // pred_fallthru
        _
    $region40: #{one_conv_forward.3} parent=5 // pred_fallthru
      _
  $region6: #{one_conv_forward.3} parent=0 // loop_footer
    %s13 = sadd.s32 1, %s9
  $region7: #{one_conv_forward.3} parent=0 // loop_footer_branch
    %8 = sbr.rel target = $region3
  $region8: #{one_conv_forward.3} parent=0 // loop_exit
    _

// kernel: one_conv_forward.2
$region0: #{one_conv_forward.2}
  #allocation0 [shape = 'u32[]', space=smem, size = 0x4, offset = 0x4, fixed_abs, tag = 'smem constant byte address 0x4 - core index']
  #allocation1 [shape = 'u32[144,128]{1,0:T(1,128)}', space=vmem, size = 0x12000, scoped, tag = 'internal scratch']
  %s0 = inlined_call_operand.vmem [shape: f32[2,18,72], index: 0, kind: input, shape index: {}]
  %s1 = inlined_call_operand.vmem [shape: f32[3,72,128], index: 1, kind: input, shape index: {}]
  %s2 = inlined_call_operand.vmem [shape: f32[1,128], index: 2, kind: input, shape index: {}]
  %s3 = inlined_call_operand.vmem [shape: f32[128,8], index: 3, kind: input, shape index: {}]
  %s4 = inlined_call_operand.vmem [shape: f32[2,16,128], index: 4, kind: output, shape index: {0}]
  %s5 = inlined_call_operand.vmem [shape: f32[2,1,8], index: 5, kind: output, shape index: {1}]
  %s6 = inlined_call_operand.vmem [shape: f32[2,1,8], index: 6, kind: output, shape index: {2}]
  %7 = xla_tuple %s4, %s5, %s6
  %s8 = sld [smem:[#allocation0]]
  $region65: #{one_conv_forward.2} parent=0
    _
  %s10 = ssub.s32 1, %s8
  %s11 = scalar_select 0, %s10, %s8
  loop: start=0, step=1, limit=4
  $region2: #{one_conv_forward.2} parent=0 // loop_pre_header
    _
  $region3: #{one_conv_forward.2} parent=0 // loop_header
    %s13 = sphi 0, %s17
    %p14 = scmp.ge.s32.totalorder %s13, 4
    %s23 = sphi 0, %s25
    %s26 = sphi 0, %s23
    %s27 = sphi 0, %s26
    %s43 = sphi 0, %s27
    %s47 = sphi 0, %s47
    %s49 = sphi 0, %s47
    %s50 = sphi 0, %s49
    %s64 = sphi 0, %s50
    %s68 = sphi 0, %s68
    %s70 = sphi 0, %s68
    %s71 = sphi 0, %s70
    %s85 = sphi 0, %s71
    %s89 = sphi 0, %s89
    %s91 = sphi 0, %s89
    %s92 = sphi 0, %s91
    %s106 = sphi 0, %s92
    %s112 = sphi 0, %s114
    %s115 = sphi 0, %s112
    %s116 = sphi 0, %s115
    %s132 = sphi 0, %s116
    %s138 = sphi 0, %s140
    %s141 = sphi 0, %s138
    %s142 = sphi 0, %s141
    %s158 = sphi 0, %s142
    %s164 = sphi 0, %s166
    %s167 = sphi 0, %s164
    %s168 = sphi 0, %s167
    %s184 = sphi 0, %s168
  $region4: #{one_conv_forward.2} parent=0 // loop_header_branch
    %16 = sbr.rel (%p14) target = $region8
  $region5: #{one_conv_forward.2} parent=0 // loop_body
    %s18 = ssub.s32 %s13, 1
    %s19 = ssub.s32 %s13, 2
    %s20 = sadd.s32 %s13, 1
    %s21 = ssub.s32 %s13, %s20
    %p22 = scmp.eq.s32.totalorder %s21, 0
    %s24 = sadd.s32 %s23, 1
    %s25 = scalar_select %p22, %s23, %s24
    %p28 = pneg %p22
    %p29 = scmp.eq.s32.totalorder %s13, 1
    %p30 = por %p28, %p29
    %p31 = scmp.ne.s32.totalorder %s23, %s26
    %p32 = scmp.eq.s32.totalorder %s13, 0
    %p33 = por %p31, %p32
    %p34 = scmp.ne.s32.totalorder %s23, %s26
    %p35 = scmp.eq.s32.totalorder %s18, 1
    %p36 = por %p34, %p35
    %p37 = scmp.ne.s32.totalorder %s26, %s27
    %p38 = scmp.eq.s32.totalorder %s18, 0
    %p39 = por %p37, %p38
    %p40 = scmp.ne.s32.totalorder %s26, %s27
    %p41 = scmp.eq.s32.totalorder %s19, 1
    %p42 = por %p40, %p41
    %p44 = scmp.ne.s32.totalorder %s27, %s43
    %p45 = scmp.eq.s32.totalorder %s19, 0
    %p46 = por %p44, %p45
    %s48 = sadd.s32 %s47, 1
    %p51 = scmp.eq.s32.totalorder %s13, 1
    %p52 = scmp.ne.s32.totalorder %s47, %s49
    %p53 = scmp.eq.s32.totalorder %s13, 0
    %p54 = por %p52, %p53
    %p55 = scmp.ne.s32.totalorder %s47, %s49
    %p56 = scmp.eq.s32.totalorder %s18, 1
    %p57 = por %p55, %p56
    %p58 = scmp.ne.s32.totalorder %s49, %s50
    %p59 = scmp.eq.s32.totalorder %s18, 0
    %p60 = por %p58, %p59
    %p61 = scmp.ne.s32.totalorder %s49, %s50
    %p62 = scmp.eq.s32.totalorder %s19, 1
    %p63 = por %p61, %p62
    %p65 = scmp.ne.s32.totalorder %s50, %s64
    %p66 = scmp.eq.s32.totalorder %s19, 0
    %p67 = por %p65, %p66
    %s69 = sadd.s32 %s68, 1
    %p72 = scmp.eq.s32.totalorder %s13, 1
    %p73 = scmp.ne.s32.totalorder %s68, %s70
    %p74 = scmp.eq.s32.totalorder %s13, 0
    %p75 = por %p73, %p74
    %p76 = scmp.ne.s32.totalorder %s68, %s70
    %p77 = scmp.eq.s32.totalorder %s18, 1
    %p78 = por %p76, %p77
    %p79 = scmp.ne.s32.totalorder %s70, %s71
    %p80 = scmp.eq.s32.totalorder %s18, 0
    %p81 = por %p79, %p80
    %p82 = scmp.ne.s32.totalorder %s70, %s71
    %p83 = scmp.eq.s32.totalorder %s19, 1
    %p84 = por %p82, %p83
    %p86 = scmp.ne.s32.totalorder %s71, %s85
    %p87 = scmp.eq.s32.totalorder %s19, 0
    %p88 = por %p86, %p87
    %s90 = sadd.s32 %s89, 1
    %p93 = scmp.eq.s32.totalorder %s13, 1
    %p94 = scmp.ne.s32.totalorder %s89, %s91
    %p95 = scmp.eq.s32.totalorder %s13, 0
    %p96 = por %p94, %p95
    %p97 = scmp.ne.s32.totalorder %s89, %s91
    %p98 = scmp.eq.s32.totalorder %s18, 1
    %p99 = por %p97, %p98
    %p100 = scmp.ne.s32.totalorder %s91, %s92
    %p101 = scmp.eq.s32.totalorder %s18, 0
    %p102 = por %p100, %p101
    %p103 = scmp.ne.s32.totalorder %s91, %s92
    %p104 = scmp.eq.s32.totalorder %s19, 1
    %p105 = por %p103, %p104
    %p107 = scmp.ne.s32.totalorder %s92, %s106
    %p108 = scmp.eq.s32.totalorder %s19, 0
    %p109 = por %p107, %p108
    %s110 = ssub.s32 %s13, %s20
    %p111 = scmp.eq.s32.totalorder %s110, 0
    %s113 = sadd.s32 %s112, 1
    %s114 = scalar_select %p111, %s112, %s113
    %p117 = pneg %p111
    %p118 = scmp.eq.s32.totalorder %s13, 1
    %p119 = por %p117, %p118
    %p120 = scmp.ne.s32.totalorder %s112, %s115
    %p121 = scmp.eq.s32.totalorder %s13, 0
    %p122 = por %p120, %p121
    %p123 = scmp.ne.s32.totalorder %s112, %s115
    %p124 = scmp.eq.s32.totalorder %s18, 1
    %p125 = por %p123, %p124
    %p126 = scmp.ne.s32.totalorder %s115, %s116
    %p127 = scmp.eq.s32.totalorder %s18, 0
    %p128 = por %p126, %p127
    %p129 = scmp.ne.s32.totalorder %s115, %s116
    %p130 = scmp.eq.s32.totalorder %s19, 1
    %p131 = por %p129, %p130
    %p133 = scmp.ne.s32.totalorder %s116, %s132
    %p134 = scmp.eq.s32.totalorder %s19, 0
    %p135 = por %p133, %p134
    %s136 = ssub.s32 %s13, %s20
    %p137 = scmp.eq.s32.totalorder %s136, 0
    %s139 = sadd.s32 %s138, 1
    %s140 = scalar_select %p137, %s138, %s139
    %p143 = pneg %p137
    %p144 = scmp.eq.s32.totalorder %s13, 1
    %p145 = por %p143, %p144
    %p146 = scmp.ne.s32.totalorder %s138, %s141
    %p147 = scmp.eq.s32.totalorder %s13, 0
    %p148 = por %p146, %p147
    %p149 = scmp.ne.s32.totalorder %s138, %s141
    %p150 = scmp.eq.s32.totalorder %s18, 1
    %p151 = por %p149, %p150
    %p152 = scmp.ne.s32.totalorder %s141, %s142
    %p153 = scmp.eq.s32.totalorder %s18, 0
    %p154 = por %p152, %p153
    %p155 = scmp.ne.s32.totalorder %s141, %s142
    %p156 = scmp.eq.s32.totalorder %s19, 1
    %p157 = por %p155, %p156
    %p159 = scmp.ne.s32.totalorder %s142, %s158
    %p160 = scmp.eq.s32.totalorder %s19, 0
    %p161 = por %p159, %p160
    %s162 = ssub.s32 %s13, %s20
    %p163 = scmp.eq.s32.totalorder %s162, 0
    %s165 = sadd.s32 %s164, 1
    %s166 = scalar_select %p163, %s164, %s165
    %p169 = pneg %p163
    %p170 = scmp.eq.s32.totalorder %s13, 1
    %p171 = por %p169, %p170
    %p172 = scmp.ne.s32.totalorder %s164, %s167
    %p173 = scmp.eq.s32.totalorder %s13, 0
    %p174 = por %p172, %p173
    %p175 = scmp.ne.s32.totalorder %s164, %s167
    %p176 = scmp.eq.s32.totalorder %s18, 1
    %p177 = por %p175, %p176
    %p178 = scmp.ne.s32.totalorder %s167, %s168
    %p179 = scmp.eq.s32.totalorder %s18, 0
    %p180 = por %p178, %p179
    %p181 = scmp.ne.s32.totalorder %s167, %s168
    %p182 = scmp.eq.s32.totalorder %s19, 1
    %p183 = por %p181, %p182
    %p185 = scmp.ne.s32.totalorder %s168, %s184
    %p186 = scmp.eq.s32.totalorder %s19, 0
    %p187 = por %p185, %p186
    %p188 = scmp.le.s32.totalorder 1, %s13
    %p189 = scmp.lt.s32.totalorder %s13, 3
    %p190 = pnand %p188, %p189
    %p191 = pneg %p190
    // Predicated region
    $region9: #{one_conv_forward.2} parent=5 // pred_check
      _
    $region10: #{one_conv_forward.2} parent=5 // pred_check_branch
      %193 = sbr.rel (%p190) target = $region12
    $region11: #{one_conv_forward.2} parent=5 // pred_region
      %s194 = ssub.s32 %s13, 1
      // Predicated region
      $region13: #{one_conv_forward.2} parent=11 // pred_check
        %p195 = pneg %p60
      $region14: #{one_conv_forward.2} parent=11 // pred_check_branch
        %197 = sbr.rel (%p195) target = $region16
      $region15: #{one_conv_forward.2} parent=11 // pred_region
        _
      $region16: #{one_conv_forward.2} parent=11 // pred_fallthru
        _
      // Predicated region
      $region17: #{one_conv_forward.2} parent=11 // pred_check
        %p198 = pneg %p81
      $region18: #{one_conv_forward.2} parent=11 // pred_check_branch
        %200 = sbr.rel (%p198) target = $region20
      $region19: #{one_conv_forward.2} parent=11 // pred_region
        _
      $region20: #{one_conv_forward.2} parent=11 // pred_fallthru
        _
      // Predicated region
      $region21: #{one_conv_forward.2} parent=11 // pred_check
        %p201 = pneg %p102
      $region22: #{one_conv_forward.2} parent=11 // pred_check_branch
        %203 = sbr.rel (%p201) target = $region24
      $region23: #{one_conv_forward.2} parent=11 // pred_region
        _
      $region24: #{one_conv_forward.2} parent=11 // pred_fallthru
        _
    $region12: #{one_conv_forward.2} parent=5 // pred_fallthru
      _
    %p204 = scmp.lt.s32.totalorder %s13, 2
    // Predicated region
    $region25: #{one_conv_forward.2} parent=5 // pred_check
      %p205 = pneg %p204
    $region26: #{one_conv_forward.2} parent=5 // pred_check_branch
      %207 = sbr.rel (%p205) target = $region28
    $region27: #{one_conv_forward.2} parent=5 // pred_region
      // Predicated region
      $region29: #{one_conv_forward.2} parent=27 // pred_check
        %p208 = pneg %p33
      $region30: #{one_conv_forward.2} parent=27 // pred_check_branch
        %210 = sbr.rel (%p208) target = $region32
      $region31: #{one_conv_forward.2} parent=27 // pred_region
        %p211 = scmp.lt.s32.totalorder %s13, 1
        %s212 = scalar_select %p211, %s13, 1
        %s213 = smul.addr %s212, 3
        %s214 = smul.addr %s213, 8
        %s215 = scalar_lea.vmem %s0, %s214
      $region32: #{one_conv_forward.2} parent=27 // pred_fallthru
        _
    $region28: #{one_conv_forward.2} parent=5 // pred_fallthru
      _
    %p216 = scmp.le.s32.totalorder 1, %s13
    %p217 = scmp.lt.s32.totalorder %s13, 3
    %p218 = pnand %p216, %p217
    %p219 = pneg %p218
    // Predicated region
    $region33: #{one_conv_forward.2} parent=5 // pred_check
      _
    $region34: #{one_conv_forward.2} parent=5 // pred_check_branch
      %221 = sbr.rel (%p218) target = $region36
    $region35: #{one_conv_forward.2} parent=5 // pred_region
      %s222 = ssub.s32 %s13, 1
      %p223 = scmp.lt.s32.totalorder %s18, 1
      %s224 = scalar_select %p223, %s18, 1
      %s225 = smul.addr %s224, 3
      %s226 = smul.addr %s225, 8
      %s227 = scalar_lea.vmem %s0, %s226
      %p228 = pneg %p39
      %p229 = pneg %p36
      %p230 = pneg %p60
      %p231 = pneg %p57
      %p232 = pneg %p81
      %p233 = pneg %p78
      %p234 = pneg %p102
      %p235 = pneg %p99
      %p236 = pneg %p128
      %p237 = pneg %p125
      %p238 = scmp.lt.s32.totalorder %s18, 1
      %s239 = scalar_select %p238, %s18, 1
      %s240 = smul.addr %s239, 2
      %s241 = smul.addr %s240, 8
      %s242 = scalar_lea.vmem %s4, %s241
      %p243 = pneg %p154
      %p244 = pneg %p151
      %p245 = scmp.lt.s32.totalorder %s18, 1
      %s246 = scalar_select %p245, %s18, 1
      %s247 = scalar_lea.vmem %s5, %s246
      %p248 = pneg %p180
      %p249 = pneg %p177
      %p250 = scmp.lt.s32.totalorder %s18, 1
      %s251 = scalar_select %p250, %s18, 1
      %s252 = scalar_lea.vmem %s6, %s251
      %p253 = scmp.lt.s32.totalorder %s18, 1
      %s254 = scalar_select %p253, %s18, 1
      %s255 = smul.addr %s254, 3
      %s256 = smul.addr %s255, 8
      %s257 = scalar_lea.vmem %s0, %s256
      %p258 = scmp.lt.s32.totalorder %s18, 1
      %s259 = scalar_select %p258, %s18, 1
      %s260 = smul.addr %s259, 2
      %s261 = smul.addr %s260, 8
      %s262 = scalar_lea.vmem %s4, %s261
      %p263 = scmp.lt.s32.totalorder %s18, 1
      %s264 = scalar_select %p263, %s18, 1
      %s265 = scalar_lea.vmem %s5, %s264
      %p266 = scmp.lt.s32.totalorder %s18, 1
      %s267 = scalar_select %p266, %s18, 1
      %s268 = scalar_lea.vmem %s6, %s267
      %v269 = vld [vmem:[%s257] sm:$0xff]
      %v270 = vld [vmem:[%s257 + $0x8] sm:$0xff]
      %v271 = vld [vmem:[%s257 + $0x10] sm:$0x3]
      %v272 = vld [vmem:[%s1] sm:$0xff]
      %v273 = vld [vmem:[%s1 + $0x8] sm:$0xff]
      %v274 = vld [vmem:[%s1 + $0x10] sm:$0xff]
      %v275 = vld [vmem:[%s1 + $0x18] sm:$0xff]
      %v276 = vld [vmem:[%s1 + $0x20] sm:$0xff]
      %v277 = vld [vmem:[%s1 + $0x28] sm:$0xff]
      %v278 = vld [vmem:[%s1 + $0x30] sm:$0xff]
      %v279 = vld [vmem:[%s1 + $0x38] sm:$0xff]
      %v280 = vld [vmem:[%s1 + $0x40] sm:$0xff]
      %s281 = scalar_lea.vmem %s1, 72
      %v282 = vld [vmem:[%s281] sm:$0xff]
      %v283 = vld [vmem:[%s281 + $0x8] sm:$0xff]
      %v284 = vld [vmem:[%s281 + $0x10] sm:$0xff]
      %v285 = vld [vmem:[%s281 + $0x18] sm:$0xff]
      %v286 = vld [vmem:[%s281 + $0x20] sm:$0xff]
      %v287 = vld [vmem:[%s281 + $0x28] sm:$0xff]
      %v288 = vld [vmem:[%s281 + $0x30] sm:$0xff]
      %v289 = vld [vmem:[%s281 + $0x38] sm:$0xff]
      %v290 = vld [vmem:[%s281 + $0x40] sm:$0xff]
      %vm294 = vcmask 1046528
      %v295 = vrot.slane %v269, 1
      %v296 = vrot.slane %v270, 1
      %v297 = vsel %vm294, %v295, %v296
      %v298 = vrot.slane %v271, 1
      %v299 = vsel %vm294, %v296, %v298
      %vm300 = vcmask 588800
      %v301 = vsel %vm300, %v297, 0
      %v303 = vsel %vm300, %v299, 0
      %305 = vmatprep.subr.mxu0 0.0
      %306 = vmatpush1.msra.mxu0 %v282
      %307 = vmatprep.subr.mxu0 0.0
      %308 = vmatpush1.msra.mxu0 %v283
      %309 = vmatprep.subr.mxu0 0.0
      %310 = vmatpush1.msra.mxu0 %v284
      %311 = vmatprep.subr.mxu0 0.0
      %312 = vmatpush1.msra.mxu0 %v285
      %313 = vmatprep.subr.mxu0 0.0
      %314 = vmatpush1.msra.mxu0 %v286
      %315 = vmatprep.subr.mxu0 0.0
      %316 = vmatpush1.msra.mxu0 %v287
      %317 = vmatprep.subr.mxu0 0.0
      %318 = vmatpush1.msra.mxu0 %v288
      %319 = vmatprep.subr.mxu0 0.0
      %320 = vmatpush1.msra.mxu0 %v289
      %321 = vmatprep.subr.mxu0 0.0
      %322 = vmatpush1.msra.mxu0 %v290
      %323 = vmatprep.subr.mxu0 0.0
      %324 = vmatpush1.msra.mxu0 0.0
      %325 = vmatprep.subr.mxu0 0.0
      %326 = vmatpush1.msra.mxu0 0.0
      %327 = vmatprep.subr.mxu0 0.0
      %328 = vmatpush1.msra.mxu0 0.0
      %329 = vmatprep.subr.mxu0 0.0
      %330 = vmatpush1.msra.mxu0 0.0
      %331 = vmatprep.subr.mxu0 0.0
      %332 = vmatpush1.msra.mxu0 0.0
      %333 = vmatprep.subr.mxu0 0.0
      %334 = vmatpush1.msra.mxu0 0.0
      %335 = vmatprep.subr.mxu0 0.0
      %336 = vmatpush1.msra.mxu0 0.0
      %337 = vmatprep.subr.mxu0 0.0
      %338 = vmatpush1.msra.mxu0 0.0
      %339 = vmatprep.subr.mxu0 0.0
      %340 = vmatpush1.msra.mxu0 0.0
      %341 = vmatprep.subr.mxu0 0.0
      %342 = vmatpush1.msra.mxu0 0.0
      %343 = vmatprep.subr.mxu0 0.0
      %344 = vmatpush1.msra.mxu0 0.0
      %345 = vmatprep.subr.mxu0 0.0
      %346 = vmatpush1.msra.mxu0 0.0
      %347 = vmatprep.subr.mxu0 0.0
      %348 = vmatpush1.msra.mxu0 0.0
      %349 = vmatprep.subr.mxu0 0.0
      %350 = vmatpush1.msra.mxu0 0.0
      %351 = vmatprep.subr.mxu0 0.0
      %352 = vmatpush1.msra.mxu0 0.0
      %353 = vmatprep.subr.mxu0 0.0
      %354 = vmatpush1.msra.mxu0 0.0
      %355 = vmatprep.subr.mxu0 0.0
      %356 = vmatpush1.msra.mxu0 0.0
      %357 = vmatprep.subr.mxu0 0.0
      %358 = vmatpush1.msra.mxu0 0.0
      %359 = vmatprep.subr.mxu0 0.0
      %360 = vmatpush1.msra.mxu0 0.0
      %361 = vmatprep.subr.mxu0 0.0
      %362 = vmatpush1.msra.mxu0 0.0
      %363 = vmatprep.subr.mxu0 0.0
      %364 = vmatpush1.msra.mxu0 0.0
      %365 = vmatprep.subr.mxu0 0.0
      %366 = vmatpush1.msra.mxu0 0.0
      %367 = vmatprep.subr.mxu0 0.0
      %368 = vmatpush1.msra.mxu0 0.0
      %369 = vmatprep.mubr.f32.mxu0 0.0
      %370 = vmatmul.mubr.f32.gmra.mrb[0].mxu0 %v301
      %v371 = vpop.f32.mrb[0].mxu0
      %v372 = vadd.f32 0.0, %v371
      %v373 = vpop.f32.mrb[0].mxu0
      %374 = vmatprep.mubr.f32.mxu0 0.0
      %375 = vmatmul.mubr.f32.gmra.mrb[0].mxu0 %v303
      %v376 = vpop.f32.mrb[0].mxu0
      %v377 = vadd.f32 0.0, %v376
      %v378 = vpop.f32.mrb[0].mxu0
      %379 = vdwg.mxu0
      %v380 = vsel %vm300, %v269, 0
      %v382 = vsel %vm300, %v270, 0
      %384 = vmatprep.subr.mxu0 0.0
      %385 = vmatpush1.msra.mxu0 %v272
      %386 = vmatprep.subr.mxu0 0.0
      %387 = vmatpush1.msra.mxu0 %v273
      %388 = vmatprep.subr.mxu0 0.0
      %389 = vmatpush1.msra.mxu0 %v274
      %390 = vmatprep.subr.mxu0 0.0
      %391 = vmatpush1.msra.mxu0 %v275
      %392 = vmatprep.subr.mxu0 0.0
      %393 = vmatpush1.msra.mxu0 %v276
      %394 = vmatprep.subr.mxu0 0.0
      %395 = vmatpush1.msra.mxu0 %v277
      %396 = vmatprep.subr.mxu0 0.0
      %397 = vmatpush1.msra.mxu0 %v278
      %398 = vmatprep.subr.mxu0 0.0
      %399 = vmatpush1.msra.mxu0 %v279
      %400 = vmatprep.subr.mxu0 0.0
      %401 = vmatpush1.msra.mxu0 %v280
      %402 = vmatprep.subr.mxu0 0.0
      %403 = vmatpush1.msra.mxu0 0.0
      %404 = vmatprep.subr.mxu0 0.0
      %405 = vmatpush1.msra.mxu0 0.0
      %406 = vmatprep.subr.mxu0 0.0
      %407 = vmatpush1.msra.mxu0 0.0
      %408 = vmatprep.subr.mxu0 0.0
      %409 = vmatpush1.msra.mxu0 0.0
      %410 = vmatprep.subr.mxu0 0.0
      %411 = vmatpush1.msra.mxu0 0.0
      %412 = vmatprep.subr.mxu0 0.0
      %413 = vmatpush1.msra.mxu0 0.0
      %414 = vmatprep.subr.mxu0 0.0
      %415 = vmatpush1.msra.mxu0 0.0
      %416 = vmatprep.subr.mxu0 0.0
      %417 = vmatpush1.msra.mxu0 0.0
      %418 = vmatprep.subr.mxu0 0.0
      %419 = vmatpush1.msra.mxu0 0.0
      %420 = vmatprep.subr.mxu0 0.0
      %421 = vmatpush1.msra.mxu0 0.0
      %422 = vmatprep.subr.mxu0 0.0
      %423 = vmatpush1.msra.mxu0 0.0
      %424 = vmatprep.subr.mxu0 0.0
      %425 = vmatpush1.msra.mxu0 0.0
      %426 = vmatprep.subr.mxu0 0.0
      %427 = vmatpush1.msra.mxu0 0.0
      %428 = vmatprep.subr.mxu0 0.0
      %429 = vmatpush1.msra.mxu0 0.0
      %430 = vmatprep.subr.mxu0 0.0
      %431 = vmatpush1.msra.mxu0 0.0
      %432 = vmatprep.subr.mxu0 0.0
      %433 = vmatpush1.msra.mxu0 0.0
      %434 = vmatprep.subr.mxu0 0.0
      %435 = vmatpush1.msra.mxu0 0.0
      %436 = vmatprep.subr.mxu0 0.0
      %437 = vmatpush1.msra.mxu0 0.0
      %438 = vmatprep.subr.mxu0 0.0
      %439 = vmatpush1.msra.mxu0 0.0
      %440 = vmatprep.subr.mxu0 0.0
      %441 = vmatpush1.msra.mxu0 0.0
      %442 = vmatprep.subr.mxu0 0.0
      %443 = vmatpush1.msra.mxu0 0.0
      %444 = vmatprep.subr.mxu0 0.0
      %445 = vmatpush1.msra.mxu0 0.0
      %446 = vmatprep.subr.mxu0 0.0
      %447 = vmatpush1.msra.mxu0 0.0
      %448 = vmatprep.mubr.f32.mxu0 0.0
      %449 = vmatmul.mubr.f32.gmra.mrb[0].mxu0 %v380
      %v450 = vpop.f32.mrb[0].mxu0
      %v451 = vadd.f32 %v372, %v450
      %v452 = vpop.f32.mrb[0].mxu0
      %453 = vmatprep.mubr.f32.mxu0 0.0
      %454 = vmatmul.mubr.f32.gmra.mrb[0].mxu0 %v382
      %v455 = vpop.f32.mrb[0].mxu0
      %v456 = vadd.f32 %v377, %v455
      %v457 = vpop.f32.mrb[0].mxu0
      %458 = vdwg.mxu0
      %s459 = scalar_lea.vmem %s1, 144
      %v460 = vld [vmem:[%s459] sm:$0xff]
      %v461 = vld [vmem:[%s459 + $0x8] sm:$0xff]
      %v462 = vld [vmem:[%s459 + $0x10] sm:$0xff]
      %v463 = vld [vmem:[%s459 + $0x18] sm:$0xff]
      %v464 = vld [vmem:[%s459 + $0x20] sm:$0xff]
      %v465 = vld [vmem:[%s459 + $0x28] sm:$0xff]
      %v466 = vld [vmem:[%s459 + $0x30] sm:$0xff]
      %v467 = vld [vmem:[%s459 + $0x38] sm:$0xff]
      %v468 = vld [vmem:[%s459 + $0x40] sm:$0xff]
      %vm469 = vcmask 1045504
      %v470 = vrot.slane %v269, 2
      %v471 = vrot.slane %v270, 2
      %v472 = vsel %vm469, %v470, %v471
      %v473 = vrot.slane %v271, 2
      %v474 = vsel %vm469, %v471, %v473
      %v475 = vsel %vm300, %v472, 0
      %v477 = vsel %vm300, %v474, 0
      %479 = vmatprep.subr.mxu0 0.0
      %480 = vmatpush1.msra.mxu0 %v460
      %481 = vmatprep.subr.mxu0 0.0
      %482 = vmatpush1.msra.mxu0 %v461
      %483 = vmatprep.subr.mxu0 0.0
      %484 = vmatpush1.msra.mxu0 %v462
      %485 = vmatprep.subr.mxu0 0.0
      %486 = vmatpush1.msra.mxu0 %v463
      %487 = vmatprep.subr.mxu0 0.0
      %488 = vmatpush1.msra.mxu0 %v464
      %489 = vmatprep.subr.mxu0 0.0
      %490 = vmatpush1.msra.mxu0 %v465
      %491 = vmatprep.subr.mxu0 0.0
      %492 = vmatpush1.msra.mxu0 %v466
      %493 = vmatprep.subr.mxu0 0.0
      %494 = vmatpush1.msra.mxu0 %v467
      %495 = vmatprep.subr.mxu0 0.0
      %496 = vmatpush1.msra.mxu0 %v468
      %497 = vmatprep.subr.mxu0 0.0
      %498 = vmatpush1.msra.mxu0 0.0
      %499 = vmatprep.subr.mxu0 0.0
      %500 = vmatpush1.msra.mxu0 0.0
      %501 = vmatprep.subr.mxu0 0.0
      %502 = vmatpush1.msra.mxu0 0.0
      %503 = vmatprep.subr.mxu0 0.0
      %504 = vmatpush1.msra.mxu0 0.0
      %505 = vmatprep.subr.mxu0 0.0
      %506 = vmatpush1.msra.mxu0 0.0
      %507 = vmatprep.subr.mxu0 0.0
      %508 = vmatpush1.msra.mxu0 0.0
      %509 = vmatprep.subr.mxu0 0.0
      %510 = vmatpush1.msra.mxu0 0.0
      %511 = vmatprep.subr.mxu0 0.0
      %512 = vmatpush1.msra.mxu0 0.0
      %513 = vmatprep.subr.mxu0 0.0
      %514 = vmatpush1.msra.mxu0 0.0
      %515 = vmatprep.subr.mxu0 0.0
      %516 = vmatpush1.msra.mxu0 0.0
      %517 = vmatprep.subr.mxu0 0.0
      %518 = vmatpush1.msra.mxu0 0.0
      %519 = vmatprep.subr.mxu0 0.0
      %520 = vmatpush1.msra.mxu0 0.0
      %521 = vmatprep.subr.mxu0 0.0
      %522 = vmatpush1.msra.mxu0 0.0
      %523 = vmatprep.subr.mxu0 0.0
      %524 = vmatpush1.msra.mxu0 0.0
      %525 = vmatprep.subr.mxu0 0.0
      %526 = vmatpush1.msra.mxu0 0.0
      %527 = vmatprep.subr.mxu0 0.0
      %528 = vmatpush1.msra.mxu0 0.0
      %529 = vmatprep.subr.mxu0 0.0
      %530 = vmatpush1.msra.mxu0 0.0
      %531 = vmatprep.subr.mxu0 0.0
      %532 = vmatpush1.msra.mxu0 0.0
      %533 = vmatprep.subr.mxu0 0.0
      %534 = vmatpush1.msra.mxu0 0.0
      %535 = vmatprep.subr.mxu0 0.0
      %536 = vmatpush1.msra.mxu0 0.0
      %537 = vmatprep.subr.mxu0 0.0
      %538 = vmatpush1.msra.mxu0 0.0
      %539 = vmatprep.subr.mxu0 0.0
      %540 = vmatpush1.msra.mxu0 0.0
      %541 = vmatprep.subr.mxu0 0.0
      %542 = vmatpush1.msra.mxu0 0.0
      %543 = vmatprep.mubr.f32.mxu0 0.0
      %544 = vmatmul.mubr.f32.gmra.mrb[0].mxu0 %v475
      %v545 = vpop.f32.mrb[0].mxu0
      %v546 = vadd.f32 0.0, %v545
      %v547 = vpop.f32.mrb[0].mxu0
      %548 = vmatprep.mubr.f32.mxu0 0.0
      %549 = vmatmul.mubr.f32.gmra.mrb[0].mxu0 %v477
      %v550 = vpop.f32.mrb[0].mxu0
      %v551 = vadd.f32 0.0, %v550
      %v552 = vpop.f32.mrb[0].mxu0
      %553 = vdwg.mxu0
      %v554 = vadd.f32 %v451, %v546
      %v555 = vadd.f32 %v456, %v551
      %v556 = vld [vmem:[%s2] sm:$0x1]
      %v558 = vlaneseq
      %v559 = vshrl.u32 %v558, 7
      %v560 = vsub.s32 0, %v559
      %v561 = vrot.slane %v556, %v560
      %v563 = vadd.f32 %v554, %v561
      %v564 = vadd.f32 %v555, %v561
      %565 = vst [vmem:[%s262] sm:$0xff] %v563
      %566 = vst [vmem:[%s262 + $0x8] sm:$0xff] %v564
      %v567 = vld [vmem:[%s3] sm:$0xff]
      %v568 = vld [vmem:[%s3 + $0x8] sm:$0xff]
      %v569 = vld [vmem:[%s3 + $0x10] sm:$0xff]
      %v570 = vld [vmem:[%s3 + $0x18] sm:$0xff]
      %v571 = vld [vmem:[%s3 + $0x20] sm:$0xff]
      %v572 = vld [vmem:[%s3 + $0x28] sm:$0xff]
      %v573 = vld [vmem:[%s3 + $0x30] sm:$0xff]
      %v574 = vld [vmem:[%s3 + $0x38] sm:$0xff]
      %v575 = vld [vmem:[%s3 + $0x40] sm:$0xff]
      %v576 = vld [vmem:[%s3 + $0x48] sm:$0xff]
      %v577 = vld [vmem:[%s3 + $0x50] sm:$0xff]
      %v578 = vld [vmem:[%s3 + $0x58] sm:$0xff]
      %v579 = vld [vmem:[%s3 + $0x60] sm:$0xff]
      %v580 = vld [vmem:[%s3 + $0x68] sm:$0xff]
      %v581 = vld [vmem:[%s3 + $0x70] sm:$0xff]
      %v582 = vld [vmem:[%s3 + $0x78] sm:$0xff]
      %583 = vmatprep.subr.mxu0 0.0
      %584 = vmatpush1.msra.mxu0 %v567
      %585 = vmatprep.subr.mxu0 0.0
      %586 = vmatpush1.msra.mxu0 %v568
      %587 = vmatprep.subr.mxu0 0.0
      %588 = vmatpush1.msra.mxu0 %v569
      %589 = vmatprep.subr.mxu0 0.0
      %590 = vmatpush1.msra.mxu0 %v570
      %591 = vmatprep.subr.mxu0 0.0
      %592 = vmatpush1.msra.mxu0 %v571
      %593 = vmatprep.subr.mxu0 0.0
      %594 = vmatpush1.msra.mxu0 %v572
      %595 = vmatprep.subr.mxu0 0.0
      %596 = vmatpush1.msra.mxu0 %v573
      %597 = vmatprep.subr.mxu0 0.0
      %598 = vmatpush1.msra.mxu0 %v574
      %599 = vmatprep.subr.mxu0 0.0
      %600 = vmatpush1.msra.mxu0 %v575
      %601 = vmatprep.subr.mxu0 0.0
      %602 = vmatpush1.msra.mxu0 %v576
      %603 = vmatprep.subr.mxu0 0.0
      %604 = vmatpush1.msra.mxu0 %v577
      %605 = vmatprep.subr.mxu0 0.0
      %606 = vmatpush1.msra.mxu0 %v578
      %607 = vmatprep.subr.mxu0 0.0
      %608 = vmatpush1.msra.mxu0 %v579
      %609 = vmatprep.subr.mxu0 0.0
      %610 = vmatpush1.msra.mxu0 %v580
      %611 = vmatprep.subr.mxu0 0.0
      %612 = vmatpush1.msra.mxu0 %v581
      %613 = vmatprep.subr.mxu0 0.0
      %614 = vmatpush1.msra.mxu0 %v582
      %615 = vmatprep.subr.mxu0 0.0
      %616 = vmatpush1.msra.mxu0 0.0
      %617 = vmatprep.subr.mxu0 0.0
      %618 = vmatpush1.msra.mxu0 0.0
      %619 = vmatprep.subr.mxu0 0.0
      %620 = vmatpush1.msra.mxu0 0.0
      %621 = vmatprep.subr.mxu0 0.0
      %622 = vmatpush1.msra.mxu0 0.0
      %623 = vmatprep.subr.mxu0 0.0
      %624 = vmatpush1.msra.mxu0 0.0
      %625 = vmatprep.subr.mxu0 0.0
      %626 = vmatpush1.msra.mxu0 0.0
      %627 = vmatprep.subr.mxu0 0.0
      %628 = vmatpush1.msra.mxu0 0.0
      %629 = vmatprep.subr.mxu0 0.0
      %630 = vmatpush1.msra.mxu0 0.0
      %631 = vmatprep.subr.mxu0 0.0
      %632 = vmatpush1.msra.mxu0 0.0
      %633 = vmatprep.subr.mxu0 0.0
      %634 = vmatpush1.msra.mxu0 0.0
      %635 = vmatprep.subr.mxu0 0.0
      %636 = vmatpush1.msra.mxu0 0.0
      %637 = vmatprep.subr.mxu0 0.0
      %638 = vmatpush1.msra.mxu0 0.0
      %639 = vmatprep.subr.mxu0 0.0
      %640 = vmatpush1.msra.mxu0 0.0
      %641 = vmatprep.subr.mxu0 0.0
      %642 = vmatpush1.msra.mxu0 0.0
      %643 = vmatprep.subr.mxu0 0.0
      %644 = vmatpush1.msra.mxu0 0.0
      %645 = vmatprep.subr.mxu0 0.0
      %646 = vmatpush1.msra.mxu0 0.0
      %647 = vmatprep.mubr.f32.mxu0 0.0
      %648 = vmatmul.mubr.f32.gmra.mrb[0].mxu0 %v563
      %v649 = vpop.f32.mrb[0].mxu0
      %v650 = vadd.f32 0.0, %v649
      %v651 = vpop.f32.mrb[0].mxu0
      %652 = vmatprep.mubr.f32.mxu0 0.0
      %653 = vmatmul.mubr.f32.gmra.mrb[0].mxu0 %v564
      %v654 = vpop.f32.mrb[0].mxu0
      %v655 = vadd.f32 0.0, %v654
      %v656 = vpop.f32.mrb[0].mxu0
      %657 = vdwg.mxu0
      %v658 = vmul.f32 %v563, %v563
      %v659 = vmul.f32 %v564, %v564
      %660 = vmatprep.subr.mxu0 0.0
      %661 = vmatpush1.msra.mxu0 %v567
      %662 = vmatprep.subr.mxu0 0.0
      %663 = vmatpush1.msra.mxu0 %v568
      %664 = vmatprep.subr.mxu0 0.0
      %665 = vmatpush1.msra.mxu0 %v569
      %666 = vmatprep.subr.mxu0 0.0
      %667 = vmatpush1.msra.mxu0 %v570
      %668 = vmatprep.subr.mxu0 0.0
      %669 = vmatpush1.msra.mxu0 %v571
      %670 = vmatprep.subr.mxu0 0.0
      %671 = vmatpush1.msra.mxu0 %v572
      %672 = vmatprep.subr.mxu0 0.0
      %673 = vmatpush1.msra.mxu0 %v573
      %674 = vmatprep.subr.mxu0 0.0
      %675 = vmatpush1.msra.mxu0 %v574
      %676 = vmatprep.subr.mxu0 0.0
      %677 = vmatpush1.msra.mxu0 %v575
      %678 = vmatprep.subr.mxu0 0.0
      %679 = vmatpush1.msra.mxu0 %v576
      %680 = vmatprep.subr.mxu0 0.0
      %681 = vmatpush1.msra.mxu0 %v577
      %682 = vmatprep.subr.mxu0 0.0
      %683 = vmatpush1.msra.mxu0 %v578
      %684 = vmatprep.subr.mxu0 0.0
      %685 = vmatpush1.msra.mxu0 %v579
      %686 = vmatprep.subr.mxu0 0.0
      %687 = vmatpush1.msra.mxu0 %v580
      %688 = vmatprep.subr.mxu0 0.0
      %689 = vmatpush1.msra.mxu0 %v581
      %690 = vmatprep.subr.mxu0 0.0
      %691 = vmatpush1.msra.mxu0 %v582
      %692 = vmatprep.subr.mxu0 0.0
      %693 = vmatpush1.msra.mxu0 0.0
      %694 = vmatprep.subr.mxu0 0.0
      %695 = vmatpush1.msra.mxu0 0.0
      %696 = vmatprep.subr.mxu0 0.0
      %697 = vmatpush1.msra.mxu0 0.0
      %698 = vmatprep.subr.mxu0 0.0
      %699 = vmatpush1.msra.mxu0 0.0
      %700 = vmatprep.subr.mxu0 0.0
      %701 = vmatpush1.msra.mxu0 0.0
      %702 = vmatprep.subr.mxu0 0.0
      %703 = vmatpush1.msra.mxu0 0.0
      %704 = vmatprep.subr.mxu0 0.0
      %705 = vmatpush1.msra.mxu0 0.0
      %706 = vmatprep.subr.mxu0 0.0
      %707 = vmatpush1.msra.mxu0 0.0
      %708 = vmatprep.subr.mxu0 0.0
      %709 = vmatpush1.msra.mxu0 0.0
      %710 = vmatprep.subr.mxu0 0.0
      %711 = vmatpush1.msra.mxu0 0.0
      %712 = vmatprep.subr.mxu0 0.0
      %713 = vmatpush1.msra.mxu0 0.0
      %714 = vmatprep.subr.mxu0 0.0
      %715 = vmatpush1.msra.mxu0 0.0
      %716 = vmatprep.subr.mxu0 0.0
      %717 = vmatpush1.msra.mxu0 0.0
      %718 = vmatprep.subr.mxu0 0.0
      %719 = vmatpush1.msra.mxu0 0.0
      %720 = vmatprep.subr.mxu0 0.0
      %721 = vmatpush1.msra.mxu0 0.0
      %722 = vmatprep.subr.mxu0 0.0
      %723 = vmatpush1.msra.mxu0 0.0
      %724 = vmatprep.mubr.f32.mxu0 0.0
      %725 = vmatmul.mubr.f32.gmra.mrb[0].mxu0 %v658
      %v726 = vpop.f32.mrb[0].mxu0
      %v727 = vadd.f32 0.0, %v726
      %v728 = vpop.f32.mrb[0].mxu0
      %729 = vmatprep.mubr.f32.mxu0 0.0
      %730 = vmatmul.mubr.f32.gmra.mrb[0].mxu0 %v659
      %v731 = vpop.f32.mrb[0].mxu0
      %v732 = vadd.f32 0.0, %v731
      %v733 = vpop.f32.mrb[0].mxu0
      %734 = vdwg.mxu0
      %vm735 = vcmask 64512
      %v736 = vsel %vm735, %v650, 0.0
      %v737 = vsel %vm735, %v655, 0.0
      %v738 = vadd.f32 %v736, %v737
      %v739 = vrot.slane %v738, 4
      %v740 = vadd.f32 %v738, %v739
      %v741 = vrot.slane %v740, 2
      %v742 = vadd.f32 %v740, %v741
      %v743 = vrot.slane %v742, 1
      %v744 = vadd.f32 %v742, %v743
      %vm745 = vcmask 57344
      %746 = vst.msk [vmem:[%s265] sm:$0x1] %vm745, %v744
      %v747 = vsel %vm735, %v727, 0.0
      %v748 = vsel %vm735, %v732, 0.0
      %v749 = vadd.f32 %v747, %v748
      %v750 = vrot.slane %v749, 4
      %v751 = vadd.f32 %v749, %v750
      %v752 = vrot.slane %v751, 2
      %v753 = vadd.f32 %v751, %v752
      %v754 = vrot.slane %v753, 1
      %v755 = vadd.f32 %v753, %v754
      %756 = vst.msk [vmem:[%s268] sm:$0x1] %vm745, %v755
      %p757 = scmp.lt.s32.totalorder %s18, 1
      %s758 = scalar_select %p757, %s18, 1
      %s759 = smul.addr %s758, 2
      %s760 = smul.addr %s759, 8
      %s761 = scalar_lea.vmem %s4, %s760
      %p762 = scmp.lt.s32.totalorder %s18, 1
      %s763 = scalar_select %p762, %s18, 1
      %s764 = scalar_lea.vmem %s5, %s763
      %p765 = scmp.lt.s32.totalorder %s18, 1
      %s766 = scalar_select %p765, %s18, 1
      %s767 = scalar_lea.vmem %s6, %s766
      // Predicated region
      $region37: #{one_conv_forward.2} parent=35 // pred_check
        %p768 = pneg %p125
      $region38: #{one_conv_forward.2} parent=35 // pred_check_branch
        %770 = sbr.rel (%p768) target = $region40
      $region39: #{one_conv_forward.2} parent=35 // pred_region
        _
      $region40: #{one_conv_forward.2} parent=35 // pred_fallthru
        _
      // Predicated region
      $region41: #{one_conv_forward.2} parent=35 // pred_check
        %p771 = pneg %p151
      $region42: #{one_conv_forward.2} parent=35 // pred_check_branch
        %773 = sbr.rel (%p771) target = $region44
      $region43: #{one_conv_forward.2} parent=35 // pred_region
        _
      $region44: #{one_conv_forward.2} parent=35 // pred_fallthru
        _
      // Predicated region
      $region45: #{one_conv_forward.2} parent=35 // pred_check
        %p774 = pneg %p177
      $region46: #{one_conv_forward.2} parent=35 // pred_check_branch
        %776 = sbr.rel (%p774) target = $region48
      $region47: #{one_conv_forward.2} parent=35 // pred_region
        _
      $region48: #{one_conv_forward.2} parent=35 // pred_fallthru
        _
    $region36: #{one_conv_forward.2} parent=5 // pred_fallthru
      _
    %p777 = scmp.le.s32.totalorder 2, %s13
    // Predicated region
    $region49: #{one_conv_forward.2} parent=5 // pred_check
      %p778 = pneg %p777
    $region50: #{one_conv_forward.2} parent=5 // pred_check_branch
      %780 = sbr.rel (%p778) target = $region52
    $region51: #{one_conv_forward.2} parent=5 // pred_region
      %s781 = ssub.s32 %s13, 2
      // Predicated region
      $region53: #{one_conv_forward.2} parent=51 // pred_check
        %p782 = pneg %p131
      $region54: #{one_conv_forward.2} parent=51 // pred_check_branch
        %784 = sbr.rel (%p782) target = $region56
      $region55: #{one_conv_forward.2} parent=51 // pred_region
        %p785 = scmp.lt.s32.totalorder %s19, 1
        %s786 = scalar_select %p785, %s19, 1
        %s787 = smul.addr %s786, 2
        %s788 = smul.addr %s787, 8
        %s789 = scalar_lea.vmem %s4, %s788
      $region56: #{one_conv_forward.2} parent=51 // pred_fallthru
        _
      // Predicated region
      $region57: #{one_conv_forward.2} parent=51 // pred_check
        %p790 = pneg %p157
      $region58: #{one_conv_forward.2} parent=51 // pred_check_branch
        %792 = sbr.rel (%p790) target = $region60
      $region59: #{one_conv_forward.2} parent=51 // pred_region
        %p793 = scmp.lt.s32.totalorder %s19, 1
        %s794 = scalar_select %p793, %s19, 1
        %s795 = scalar_lea.vmem %s5, %s794
      $region60: #{one_conv_forward.2} parent=51 // pred_fallthru
        _
      // Predicated region
      $region61: #{one_conv_forward.2} parent=51 // pred_check
        %p796 = pneg %p183
      $region62: #{one_conv_forward.2} parent=51 // pred_check_branch
        %798 = sbr.rel (%p796) target = $region64
      $region63: #{one_conv_forward.2} parent=51 // pred_region
        %p799 = scmp.lt.s32.totalorder %s19, 1
        %s800 = scalar_select %p799, %s19, 1
        %s801 = scalar_lea.vmem %s6, %s800
      $region64: #{one_conv_forward.2} parent=51 // pred_fallthru
        _
    $region52: #{one_conv_forward.2} parent=5 // pred_fallthru
      _
  $region6: #{one_conv_forward.2} parent=0 // loop_footer
    %s17 = sadd.s32 1, %s13
  $region7: #{one_conv_forward.2} parent=0 // loop_footer_branch
    %12 = sbr.rel target = $region3
  $region8: #{one_conv_forward.2} parent=0 // loop_exit
    _

</llo_original>
